<compile_context>
chip_gen: v6e
topology: v6e:2x2x1
jax: 0.10.0
libtpu: 0.0.40
codegen_flags: <defaults>
</compile_context>

<pallas_src>
import functools

import numpy as np

import jax
import jax.numpy as jnp
from jax.experimental import pallas as pl
from jax.experimental.pallas import tpu as pltpu


def _build_avg_matrix(L: int, kernel_size: int) -> np.ndarray:
    """(L, L) matrix A so that mean = A @ x implements the edge-replicated
    stride-1 average pool along the time axis (rows sum to 1)."""
    pad = (kernel_size - 1) // 2
    taps = np.arange(L)[:, None] + np.arange(kernel_size)[None, :] - pad  # (L, k)
    taps = np.clip(taps, 0, L - 1)
    A = np.zeros((L, L), dtype=np.float32)
    np.add.at(
        A,
        (np.repeat(np.arange(L), kernel_size), taps.reshape(-1)),
        np.float32(1.0 / kernel_size),
    )
    return A


def _decomp_kernel(a_ref, x_ref, res_ref, mean_ref, *, precision):
    # a_ref: (L, L) averaging matrix (same block every step -> resident).
    # x_ref / res_ref / mean_ref: (L, T) lane-dense tiles.
    x = x_ref[...]  # no pre-dot upcast: bf16 feeds the MXU natively
    mean = jnp.dot(
        a_ref[...], x, preferred_element_type=jnp.float32, precision=precision
    )
    mean_ref[...] = mean.astype(mean_ref.dtype)
    res_ref[...] = (x.astype(jnp.float32) - mean).astype(res_ref.dtype)


def _tpu_vmem_capacity_bytes() -> int:
    try:
        cap = int(pltpu.get_tpu_info().vmem_capacity_bytes)
        if cap > 0:
            return cap
    except Exception:
        pass
    return 64 << 20  # conservative default (v7x per-TensorCore VMEM)


def _budgets(vmem_capacity: int):
    """(per-step tile budget, vmem_limit cap) -- generation aware."""
    if vmem_capacity <= (72 << 20):      # v7x-class: 64 MiB per TensorCore
        return 20 << 20, 56 << 20
    return 48 << 20, 100 << 20           # v5e / v6e: 128 MiB


def _pick_lane_tile(total: int, L: int, itemsize: int, budget: int) -> int:
    """Largest lane tile (multiple of 128 dividing `total`, which is itself a
    multiple of 128) whose double-buffered working set fits `budget`; prefer
    >= 2 grid steps so both v7x TensorCores get work."""
    tile = 128
    for cand in (1024, 512, 256, 128):
        if total % cand != 0:
            continue
        # double-buffered {x, res, mean} tiles + in-kernel f32 temporaries
        working = (2 * 3 * itemsize + 2 * 4) * L * cand
        if working <= budget:
            tile = cand
            break
    while tile > 128 and total // tile < 2:
        tile //= 2
    return tile


def series_decomp(x: jax.Array, kernel_size: int):
    """x: (B, L, C). Returns (res, moving_mean), both (B, L, C)."""
    if kernel_size % 2 != 1:
        raise ValueError(
            "series_decomp requires an odd kernel_size (the reference module's "
            "`x - moving_mean` would shape-mismatch otherwise)."
        )
    B, L, C = x.shape
    itemsize = jnp.dtype(x.dtype).itemsize

    # TODO(synk): for very long sequences (L >~ 1-2k) tile L with halos and a
    # banded (L_tile, L_tile + 2*pad) slice of A (or use k shifted-adds on the
    # VPU) instead of a dense (L, L) averaging matrix.
    A_np = _build_avg_matrix(L, kernel_size)
    if x.dtype == jnp.bfloat16:
        # Native single-pass bf16 MXU: bf16 operands, f32 accumulation.
        A = jnp.asarray(A_np, dtype=jnp.bfloat16)
        precisions = (jax.lax.Precision.DEFAULT,)
    elif x.dtype == jnp.float32:
        # HIGH (bf16_3x) halves the MXU passes of HIGHEST and stays close to
        # f32 accuracy for a k-tap mean; fall back to HIGHEST if rejected.
        A = jnp.asarray(A_np)
        precisions = (jax.lax.Precision.HIGH, jax.lax.Precision.HIGHEST)
    else:
        A = jnp.asarray(A_np)
        precisions = (jax.lax.Precision.HIGHEST,)

    a_bytes = L * L * jnp.dtype(A.dtype).itemsize
    tile_budget, limit_cap = _budgets(_tpu_vmem_capacity_bytes())
    tile_budget = max(tile_budget - 2 * a_bytes, 4 << 20)  # account for A

    # A's block index never changes -> a single buffer suffices (if supported).
    buffered_one = None
    if hasattr(pl, "Buffered"):
        try:
            buffered_one = pl.Buffered(1)
        except Exception:
            buffered_one = None

    def _run(x_in, grid, x_spec, out_spec, dim_semantics, lane_tile):
        tile_bytes = (2 * 3 * itemsize + 2 * 4) * L * lane_tile
        out_shape = (
            jax.ShapeDtypeStruct(x_in.shape, x.dtype),  # res
            jax.ShapeDtypeStruct(x_in.shape, x.dtype),  # moving_mean
        )
        attempts = []
        for prec in precisions:
            if buffered_one is not None:
                attempts.append((prec, buffered_one))
            attempts.append((prec, None))
        for idx, (prec, a_mode) in enumerate(attempts):
            a_buffers = 1 if a_mode is not None else 2
            vmem_limit = int(
                min(
                    max(a_buffers * a_bytes + tile_bytes + (4 << 20), 32 << 20),
                    limit_cap,
                )
            )
            a_kwargs = {} if a_mode is None else {"pipeline_mode": a_mode}
            try:
                a_spec = pl.BlockSpec((L, L), lambda *_: (0, 0), **a_kwargs)
                return pl.pallas_call(
                    functools.partial(_decomp_kernel, precision=prec),
                    out_shape=out_shape,
                    grid_spec=pltpu.PrefetchScalarGridSpec(
                        num_scalar_prefetch=0,
                        grid=grid,
                        in_specs=[a_spec, x_spec],
                        out_specs=(out_spec, out_spec),
                    ),
                    compiler_params=pltpu.CompilerParams(
                        dimension_semantics=dim_semantics,
                        vmem_limit_bytes=vmem_limit,
                    ),
                )(A, x_in)
            except Exception:
                # More conservative config (no single-buffered A and/or HIGHEST).
                if idx == len(attempts) - 1:
                    raise
        raise AssertionError("unreachable")

    if C % 128 == 0:
        # Fast path: native (B, L, C) layout -- no wrapper transposes, so no
        # extra full-tensor HBM round-trips around the kernel.
        sq = pl.Squeezed() if hasattr(pl, "Squeezed") else None
        TC = _pick_lane_tile(C, L, itemsize, tile_budget)
        grid = (B, C // TC)
        x_spec = pl.BlockSpec((sq, L, TC), lambda b, c: (b, 0, c))
        o_spec = pl.BlockSpec((sq, L, TC), lambda b, c: (b, 0, c))
        res, moving_mean = _run(
            x, grid, x_spec, o_spec, ("parallel", "parallel"), TC
        )
        return res, moving_mean

    # Fallback for small / ragged C: fuse batch+channel onto the lane axis and
    # zero-pad it to a multiple of 256 so stores stay unmasked 128-lane and
    # there are always >= 2 grid steps.
    N = B * C
    Np = ((N + 255) // 256) * 256
    x_fused = jnp.transpose(x, (1, 0, 2)).reshape(L, N)
    if Np != N:
        x_fused = jnp.pad(x_fused, ((0, 0), (0, Np - N)))
    TN = _pick_lane_tile(Np, L, itemsize, tile_budget)
    grid = (Np // TN,)
    x_spec = pl.BlockSpec((L, TN), lambda j: (0, j))
    o_spec = pl.BlockSpec((L, TN), lambda j: (0, j))
    res_f, mean_f = _run(x_fused, grid, x_spec, o_spec, ("parallel",), TN)
    if Np != N:
        res_f, mean_f = res_f[:, :N], mean_f[:, :N]
    res = jnp.transpose(res_f.reshape(L, B, C), (1, 0, 2))
    moving_mean = jnp.transpose(mean_f.reshape(L, B, C), (1, 0, 2))
    return res, moving_mean


def _reference(x, kernel_size):
    """Pure-JAX reference mirroring the PyTorch module (odd kernel_size)."""
    pad = (kernel_size - 1) // 2
    front = jnp.repeat(x[:, 0:1, :], pad, axis=1)
    end = jnp.repeat(x[:, -1:, :], pad, axis=1)
    xp = jnp.concatenate([front, x, end], axis=1)
    L = x.shape[1]
    mean = jnp.stack(
        [xp[:, i:i + L, :] for i in range(kernel_size)], axis=0
    ).mean(axis=0)
    return x - mean, mean


if __name__ == "__main__":
    kernel_size = 5
    key = jax.random.PRNGKey(0)
    k1, k2 = jax.random.split(key)

    # Fallback (fused + padded) path: small / ragged channel count.
    x_small = jax.random.normal(k1, (2, 16, 8), dtype=jnp.float32)
    res, mean = series_decomp(x_small, kernel_size)
    jax.block_until_ready((res, mean))
    res_ref, mean_ref = _reference(x_small, kernel_size)
    assert res.shape == x_small.shape and mean.shape == x_small.shape
    # 2e-5 tolerance: the f32 matmul runs as bf16_3x (Precision.HIGH) on the MXU.
    assert jnp.allclose(mean, mean_ref, atol=2e-5, rtol=2e-5)
    assert jnp.allclose(res, res_ref, atol=2e-5, rtol=2e-5)

    # Native-layout fast path: channels a multiple of 128 (no wrapper transposes).
    x_wide = jax.random.normal(k2, (2, 16, 128), dtype=jnp.float32)
    res_w, mean_w = series_decomp(x_wide, kernel_size)
    jax.block_until_ready((res_w, mean_w))
    res_wr, mean_wr = _reference(x_wide, kernel_size)
    assert jnp.allclose(mean_w, mean_wr, atol=2e-5, rtol=2e-5)
    assert jnp.allclose(res_w, res_wr, atol=2e-5, rtol=2e-5)

    print("KERNEL_OK")
</pallas_src>

<mosaic_0001>
module attributes {stable_mosaic.version = 11 : i64} {
  func.func @_decomp_kernel(%arg0: i32, %arg1: memref<16x16xf32, #tpu.memory_space<vmem>>, %arg2: memref<16x128xf32, #tpu.memory_space<vmem>>, %arg3: memref<16x128xf32, #tpu.memory_space<vmem>>, %arg4: memref<16x128xf32, #tpu.memory_space<vmem>>) attributes {dimension_semantics = [#tpu.dimension_semantics<parallel>], iteration_bounds = array<i64: 2>, scalar_prefetch = 0 : i64, scratch_operands = 0 : i64, tpu.core_type = #tpu.core_type<tc>, window_params = [{pipeline_mode = #tpu.pipeline_mode<synchronous>, transform_indices = @transform_0, window_bounds = array<i64: 16, 16>}, {transform_indices = @transform_1, window_bounds = array<i64: 16, 128>}, {transform_indices = @transform_2, window_bounds = array<i64: 16, 128>}, {transform_indices = @transform_3, window_bounds = array<i64: 16, 128>}]} {
    %c0 = arith.constant 0 : index
    %c0_0 = arith.constant 0 : index
    %0 = vector.load %arg2[%c0, %c0_0] : memref<16x128xf32, #tpu.memory_space<vmem>>, vector<16x128xf32>
    %c0_1 = arith.constant 0 : index
    %c0_2 = arith.constant 0 : index
    %1 = vector.load %arg1[%c0_1, %c0_2] : memref<16x16xf32, #tpu.memory_space<vmem>>, vector<16x16xf32>
    %cst = arith.constant dense<0.000000e+00> : vector<16x128xf32>
    %2 = tpu.matmul %1, %0, %cst {dimension_numbers = #tpu.dot_dimension_numbers<[1], [0], [0], [1], [0, 0, 1, 1], [], []>, precision = #tpu.contract_precision<fp32>} : vector<16x16xf32>, vector<16x128xf32>, vector<16x128xf32> -> vector<16x128xf32>
    %c0_3 = arith.constant 0 : index
    %c0_4 = arith.constant 0 : index
    %3 = vector.load %arg4[%c0_3, %c0_4] : memref<16x128xf32, #tpu.memory_space<vmem>>, vector<16x128xf32>
    tpu.vector_store %arg4[%c0_3, %c0_4], %2 {strides = array<i32>} : memref<16x128xf32, #tpu.memory_space<vmem>>, vector<16x128xf32>,
    %4 = arith.subf %0, %2 : vector<16x128xf32>
    %c0_5 = arith.constant 0 : index
    %c0_6 = arith.constant 0 : index
    %5 = vector.load %arg3[%c0_5, %c0_6] : memref<16x128xf32, #tpu.memory_space<vmem>>, vector<16x128xf32>
    tpu.vector_store %arg3[%c0_5, %c0_6], %4 {strides = array<i32>} : memref<16x128xf32, #tpu.memory_space<vmem>>, vector<16x128xf32>,
    return
  }
  func.func @transform_0(%arg0: i32) -> (i32, i32) {
    %c0_i32 = arith.constant 0 : i32
    %c0_i32_0 = arith.constant 0 : i32
    %c0_i32_1 = arith.constant 0 : i32
    return %c0_i32, %c0_i32_0 : i32, i32
  }
  func.func @transform_1(%arg0: i32) -> (i32, i32) {
    %c0_i32 = arith.constant 0 : i32
    %c0_i32_0 = arith.constant 0 : i32
    return %c0_i32, %arg0 : i32, i32
  }
  func.func @transform_2(%arg0: i32) -> (i32, i32) {
    %c0_i32 = arith.constant 0 : i32
    %c0_i32_0 = arith.constant 0 : i32
    return %c0_i32, %arg0 : i32, i32
  }
  func.func @transform_3(%arg0: i32) -> (i32, i32) {
    %c0_i32 = arith.constant 0 : i32
    %c0_i32_0 = arith.constant 0 : i32
    return %c0_i32, %arg0 : i32, i32
  }
}

module attributes {stable_mosaic.version = 11 : i64} {
  func.func @_decomp_kernel(%arg0: i32, %arg1: memref<16x16xf32, #tpu.memory_space<vmem>>, %arg2: memref<16x128xf32, #tpu.memory_space<vmem>>, %arg3: memref<16x128xf32, #tpu.memory_space<vmem>>, %arg4: memref<16x128xf32, #tpu.memory_space<vmem>>) attributes {dimension_semantics = [#tpu.dimension_semantics<parallel>], iteration_bounds = array<i64: 2>, scalar_prefetch = 0 : i64, scratch_operands = 0 : i64, tpu.core_type = #tpu.core_type<tc>, window_params = [{pipeline_mode = #tpu.pipeline_mode<synchronous>, transform_indices = @transform_0, window_bounds = array<i64: 16, 16>}, {transform_indices = @transform_1, window_bounds = array<i64: 16, 128>}, {transform_indices = @transform_2, window_bounds = array<i64: 16, 128>}, {transform_indices = @transform_3, window_bounds = array<i64: 16, 128>}]} {
    %c0 = arith.constant 0 : index
    %c0_0 = arith.constant 0 : index
    %0 = vector.load %arg2[%c0, %c0_0] : memref<16x128xf32, #tpu.memory_space<vmem>>, vector<16x128xf32>
    %c0_1 = arith.constant 0 : index
    %c0_2 = arith.constant 0 : index
    %1 = vector.load %arg1[%c0_1, %c0_2] : memref<16x16xf32, #tpu.memory_space<vmem>>, vector<16x16xf32>
    %cst = arith.constant dense<0.000000e+00> : vector<16x128xf32>
    %2 = tpu.matmul %1, %0, %cst {dimension_numbers = #tpu.dot_dimension_numbers<[1], [0], [0], [1], [0, 0, 1, 1], [], []>, precision = #tpu.contract_precision<fp32>} : vector<16x16xf32>, vector<16x128xf32>, vector<16x128xf32> -> vector<16x128xf32>
    %c0_3 = arith.constant 0 : index
    %c0_4 = arith.constant 0 : index
    %3 = vector.load %arg4[%c0_3, %c0_4] : memref<16x128xf32, #tpu.memory_space<vmem>>, vector<16x128xf32>
    tpu.vector_store %arg4[%c0_3, %c0_4], %2 {strides = array<i32>} : memref<16x128xf32, #tpu.memory_space<vmem>>, vector<16x128xf32>,
    %4 = arith.subf %0, %2 : vector<16x128xf32>
    %c0_5 = arith.constant 0 : index
    %c0_6 = arith.constant 0 : index
    %5 = vector.load %arg3[%c0_5, %c0_6] : memref<16x128xf32, #tpu.memory_space<vmem>>, vector<16x128xf32>
    tpu.vector_store %arg3[%c0_5, %c0_6], %4 {strides = array<i32>} : memref<16x128xf32, #tpu.memory_space<vmem>>, vector<16x128xf32>,
    return
  }
  func.func @transform_0(%arg0: i32) -> (i32, i32) {
    %c0_i32 = arith.constant 0 : i32
    %c0_i32_0 = arith.constant 0 : i32
    %c0_i32_1 = arith.constant 0 : i32
    return %c0_i32, %c0_i32_0 : i32, i32
  }
  func.func @transform_1(%arg0: i32) -> (i32, i32) {
    %c0_i32 = arith.constant 0 : i32
    %c0_i32_0 = arith.constant 0 : i32
    return %c0_i32, %arg0 : i32, i32
  }
  func.func @transform_2(%arg0: i32) -> (i32, i32) {
    %c0_i32 = arith.constant 0 : i32
    %c0_i32_0 = arith.constant 0 : i32
    return %c0_i32, %arg0 : i32, i32
  }
  func.func @transform_3(%arg0: i32) -> (i32, i32) {
    %c0_i32 = arith.constant 0 : i32
    %c0_i32_0 = arith.constant 0 : i32
    return %c0_i32, %arg0 : i32, i32
  }
}

</mosaic_0001>

<llo_original>
// kernel: tpu_custom_call.1
$region0: #{tpu_custom_call.1}
  #allocation0 [shape = 'u32[]', space=smem, size = 0x4, offset = 0x4, fixed_abs, tag = 'smem constant byte address 0x4 - core index']
  #allocation1 [shape = 'u32[144,128]{1,0:T(1,128)}', space=vmem, size = 0x12000, scoped, tag = 'internal scratch']
  %s0 = inlined_call_operand.hbm [shape: f32[16,16], index: 0, kind: input, shape index: {}]
  %s1 = inlined_call_operand.hbm [shape: f32[16,256], index: 1, kind: input, shape index: {}]
  %s2 = inlined_call_operand.hbm [shape: f32[16,256], index: 2, kind: output, shape index: {0}]
  %s3 = inlined_call_operand.hbm [shape: f32[16,256], index: 3, kind: output, shape index: {1}]
  %4 = xla_tuple %s2, %s3
  %s5 = sld [smem:[#allocation0]]
  $region57: #{tpu_custom_call.1} parent=0
    _
  %s7 = ssub.s32 1, %s5
  %s8 = scalar_select 0, %s7, %s5
  $region1: #{tpu_custom_call.1} parent=0
    #allocation2 [shape = 'u8[8192]{0}', space=vmem, size = 0x2000, scoped, tag = 'input window, operand 0, single buffered']
    #allocation3 [shape = 's32[2]{0}', space=sflag, size = 0x8, scoped, tag = 'scoped memory for tpu_custom_call.1']
    #allocation4 [shape = 's32[2]{0}', space=sflag, size = 0x8, scoped, tag = 'scoped memory for tpu_custom_call.1']
    #allocation5 [shape = 'u8[16384]{0}', space=vmem, size = 0x4000, scoped, tag = 'input window, operand 1']
    #allocation6 [shape = 's32[2]{0}', space=sflag, size = 0x8, scoped, tag = 'scoped memory for tpu_custom_call.1']
    #allocation7 [shape = 'u8[16384]{0}', space=vmem, size = 0x4000, scoped, tag = 'output window, operand 0']
    #allocation8 [shape = 'u8[16384]{0}', space=vmem, size = 0x4000, scoped, tag = 'output window, operand 1']
    #allocation9 [shape = 's32[2]{0}', space=sflag, size = 0x8, scoped, tag = 'scoped memory for tpu_custom_call.1']
    %9 = vsyncpa [#allocation3], 0
    %10 = vsyncpa [#allocation6], 0
    %s11 = scalar_lea.sflag [#allocation6], 1
    %12 = vsyncpa %s11, 0
    %13 = vsyncpa [#allocation4], 0
    %s14 = scalar_lea.sflag [#allocation4], 1
    %15 = vsyncpa %s14, 0
    %16 = vsyncpa [#allocation9], 0
    %s17 = scalar_lea.sflag [#allocation9], 1
    %18 = vsyncpa %s17, 0
    loop: start=0, step=1, limit=4
    $region2: #{tpu_custom_call.1} parent=1 // loop_pre_header
      _
    $region3: #{tpu_custom_call.1} parent=1 // loop_header
      %s20 = sphi 0, %s24
      %p21 = scmp.ge.s32.totalorder %s20, 4
      %s28 = sphi 0, %s28
      %s30 = sphi 0, %s28
      %s31 = sphi 0, %s30
      %s45 = sphi 0, %s31
      %s51 = sphi 0, %s53
      %s54 = sphi 0, %s51
      %s55 = sphi 0, %s54
      %s71 = sphi 0, %s55
      %s77 = sphi 0, %s79
      %s80 = sphi 0, %s77
      %s81 = sphi 0, %s80
      %s97 = sphi 0, %s81
      %s103 = sphi 0, %s105
      %s106 = sphi 0, %s103
      %s107 = sphi 0, %s106
      %s123 = sphi 0, %s107
    $region4: #{tpu_custom_call.1} parent=1 // loop_header_branch
      %23 = sbr.rel (%p21) target = $region8
    $region5: #{tpu_custom_call.1} parent=1 // loop_body
      %s25 = ssub.s32 %s20, 1
      %s26 = ssub.s32 %s20, 2
      %s27 = sadd.s32 %s20, 1
      %s29 = sadd.s32 %s28, 1
      %p32 = scmp.eq.s32.totalorder %s20, 1
      %p33 = scmp.ne.s32.totalorder %s28, %s30
      %p34 = scmp.eq.s32.totalorder %s20, 0
      %p35 = por %p33, %p34
      %p36 = scmp.ne.s32.totalorder %s28, %s30
      %p37 = scmp.eq.s32.totalorder %s25, 1
      %p38 = por %p36, %p37
      %p39 = scmp.ne.s32.totalorder %s30, %s31
      %p40 = scmp.eq.s32.totalorder %s25, 0
      %p41 = por %p39, %p40
      %p42 = scmp.ne.s32.totalorder %s30, %s31
      %p43 = scmp.eq.s32.totalorder %s26, 1
      %p44 = por %p42, %p43
      %p46 = scmp.ne.s32.totalorder %s31, %s45
      %p47 = scmp.eq.s32.totalorder %s26, 0
      %p48 = por %p46, %p47
      %s49 = ssub.s32 %s20, %s27
      %p50 = scmp.eq.s32.totalorder %s49, 0
      %s52 = sadd.s32 %s51, 1
      %s53 = scalar_select %p50, %s51, %s52
      %p56 = pneg %p50
      %p57 = scmp.eq.s32.totalorder %s20, 1
      %p58 = por %p56, %p57
      %p59 = scmp.ne.s32.totalorder %s51, %s54
      %p60 = scmp.eq.s32.totalorder %s20, 0
      %p61 = por %p59, %p60
      %p62 = scmp.ne.s32.totalorder %s51, %s54
      %p63 = scmp.eq.s32.totalorder %s25, 1
      %p64 = por %p62, %p63
      %p65 = scmp.ne.s32.totalorder %s54, %s55
      %p66 = scmp.eq.s32.totalorder %s25, 0
      %p67 = por %p65, %p66
      %p68 = scmp.ne.s32.totalorder %s54, %s55
      %p69 = scmp.eq.s32.totalorder %s26, 1
      %p70 = por %p68, %p69
      %p72 = scmp.ne.s32.totalorder %s55, %s71
      %p73 = scmp.eq.s32.totalorder %s26, 0
      %p74 = por %p72, %p73
      %s75 = ssub.s32 %s20, %s27
      %p76 = scmp.eq.s32.totalorder %s75, 0
      %s78 = sadd.s32 %s77, 1
      %s79 = scalar_select %p76, %s77, %s78
      %p82 = pneg %p76
      %p83 = scmp.eq.s32.totalorder %s20, 1
      %p84 = por %p82, %p83
      %p85 = scmp.ne.s32.totalorder %s77, %s80
      %p86 = scmp.eq.s32.totalorder %s20, 0
      %p87 = por %p85, %p86
      %p88 = scmp.ne.s32.totalorder %s77, %s80
      %p89 = scmp.eq.s32.totalorder %s25, 1
      %p90 = por %p88, %p89
      %p91 = scmp.ne.s32.totalorder %s80, %s81
      %p92 = scmp.eq.s32.totalorder %s25, 0
      %p93 = por %p91, %p92
      %p94 = scmp.ne.s32.totalorder %s80, %s81
      %p95 = scmp.eq.s32.totalorder %s26, 1
      %p96 = por %p94, %p95
      %p98 = scmp.ne.s32.totalorder %s81, %s97
      %p99 = scmp.eq.s32.totalorder %s26, 0
      %p100 = por %p98, %p99
      %s101 = ssub.s32 %s20, %s27
      %p102 = scmp.eq.s32.totalorder %s101, 0
      %s104 = sadd.s32 %s103, 1
      %s105 = scalar_select %p102, %s103, %s104
      %p108 = pneg %p102
      %p109 = scmp.eq.s32.totalorder %s20, 1
      %p110 = por %p108, %p109
      %p111 = scmp.ne.s32.totalorder %s103, %s106
      %p112 = scmp.eq.s32.totalorder %s20, 0
      %p113 = por %p111, %p112
      %p114 = scmp.ne.s32.totalorder %s103, %s106
      %p115 = scmp.eq.s32.totalorder %s25, 1
      %p116 = por %p114, %p115
      %p117 = scmp.ne.s32.totalorder %s106, %s107
      %p118 = scmp.eq.s32.totalorder %s25, 0
      %p119 = por %p117, %p118
      %p120 = scmp.ne.s32.totalorder %s106, %s107
      %p121 = scmp.eq.s32.totalorder %s26, 1
      %p122 = por %p120, %p121
      %p124 = scmp.ne.s32.totalorder %s107, %s123
      %p125 = scmp.eq.s32.totalorder %s26, 0
      %p126 = por %p124, %p125
      %p127 = scmp.le.s32.totalorder 1, %s20
      %p128 = scmp.lt.s32.totalorder %s20, 3
      %p129 = pnand %p127, %p128
      %p130 = pneg %p129
      // Predicated region
      $region9: #{tpu_custom_call.1} parent=5 // pred_check
        _
      $region10: #{tpu_custom_call.1} parent=5 // pred_check_branch
        %132 = sbr.rel (%p129) target = $region12
      $region11: #{tpu_custom_call.1} parent=5 // pred_region
        %s133 = ssub.s32 %s20, 1
        // Predicated region
        $region13: #{tpu_custom_call.1} parent=11 // pred_check
          %p134 = pneg %p41
        $region14: #{tpu_custom_call.1} parent=11 // pred_check_branch
          %136 = sbr.rel (%p134) target = $region16
        $region15: #{tpu_custom_call.1} parent=11 // pred_region
          %s138 = ssub.s32 256, 256
          %139 = vsyncadd [#allocation3], %s138
          %s140 = sshll.u32 [#allocation2], 4
          %s141 = int_to_ptr.vmem [resolvable:$true] %s140
          %146 = dma.hbm_to_vmem [thread:$0]  %s0, 256, %s141, [#allocation3], 128, 128, 8
        $region16: #{tpu_custom_call.1} parent=11 // pred_fallthru
          _
      $region12: #{tpu_custom_call.1} parent=5 // pred_fallthru
        _
      %p147 = scmp.lt.s32.totalorder %s20, 2
      // Predicated region
      $region17: #{tpu_custom_call.1} parent=5 // pred_check
        %p148 = pneg %p147
      $region18: #{tpu_custom_call.1} parent=5 // pred_check_branch
        %150 = sbr.rel (%p148) target = $region20
      $region19: #{tpu_custom_call.1} parent=5 // pred_region
        // Predicated region
        $region21: #{tpu_custom_call.1} parent=19 // pred_check
          %p151 = pneg %p61
        $region22: #{tpu_custom_call.1} parent=19 // pred_check_branch
          %153 = sbr.rel (%p151) target = $region24
        $region23: #{tpu_custom_call.1} parent=19 // pred_region
          %s154 = sand.u32 %s51, 1
          %s155 = scalar_lea.sflag [#allocation6], %s154
          %s156 = sand.u32 %s51, 1
          %s157 = smul.addr %s156, 16
          %s158 = scalar_lea.vmem [#allocation5], %s157
          %s160 = ssub.s32 256, 256
          %161 = vsyncadd %s155, %s160
          %s162 = smul.addr %s20, 128
          %s163 = scalar_lea.hbm %s1, %s162
          %s164 = sshll.u32 %s158, 4
          %s165 = int_to_ptr.vmem [resolvable:$true] %s164
          %170 = dma.hbm_to_vmem [thread:$0]  %s163, 256, %s165, %s155, 256, 128, 8
        $region24: #{tpu_custom_call.1} parent=19 // pred_fallthru
          _
      $region20: #{tpu_custom_call.1} parent=5 // pred_fallthru
        _
      %p171 = scmp.le.s32.totalorder 1, %s20
      %p172 = scmp.lt.s32.totalorder %s20, 3
      %p173 = pnand %p171, %p172
      %p174 = pneg %p173
      // Predicated region
      $region25: #{tpu_custom_call.1} parent=5 // pred_check
        _
      $region26: #{tpu_custom_call.1} parent=5 // pred_check_branch
        %176 = sbr.rel (%p173) target = $region28
      $region27: #{tpu_custom_call.1} parent=5 // pred_region
        %s177 = ssub.s32 %s20, 1
        // Predicated region
        $region29: #{tpu_custom_call.1} parent=27 // pred_check
          %p178 = pneg %p41
        $region30: #{tpu_custom_call.1} parent=27 // pred_check_branch
          %180 = sbr.rel (%p178) target = $region32
        $region31: #{tpu_custom_call.1} parent=27 // pred_region
          %181 = dma.done [#allocation3], 256
        $region32: #{tpu_custom_call.1} parent=27 // pred_fallthru
          _
        %s182 = sand.u32 %s54, 1
        %s183 = scalar_lea.sflag [#allocation6], %s182
        %s184 = sand.u32 %s54, 1
        %s185 = smul.addr %s184, 16
        %s186 = scalar_lea.vmem [#allocation5], %s185
        // Predicated region
        $region33: #{tpu_custom_call.1} parent=27 // pred_check
          %p187 = pneg %p67
        $region34: #{tpu_custom_call.1} parent=27 // pred_check_branch
          %189 = sbr.rel (%p187) target = $region36
        $region35: #{tpu_custom_call.1} parent=27 // pred_region
          %190 = dma.done %s183, 256
        $region36: #{tpu_custom_call.1} parent=27 // pred_fallthru
          _
        %p191 = pneg %p41
        %p192 = pneg %p38
        %s193 = sand.u32 %s54, 1
        %s194 = scalar_lea.sflag [#allocation6], %s193
        %s195 = sand.u32 %s54, 1
        %s196 = smul.addr %s195, 16
        %s197 = scalar_lea.vmem [#allocation5], %s196
        %p198 = pneg %p67
        %p199 = pneg %p64
        %p200 = pneg %p93
        %p201 = pneg %p90
        %s202 = sand.u32 %s80, 1
        %s203 = scalar_lea.sflag [#allocation4], %s202
        %s204 = sand.u32 %s80, 1
        %s205 = smul.addr %s204, 16
        %s206 = scalar_lea.vmem [#allocation7], %s205
        %p207 = pneg %p119
        %p208 = pneg %p116
        %s209 = sand.u32 %s106, 1
        %s210 = scalar_lea.sflag [#allocation9], %s209
        %s211 = sand.u32 %s106, 1
        %s212 = smul.addr %s211, 16
        %s213 = scalar_lea.vmem [#allocation8], %s212
        %v214 = vld [vmem:[%s186] sm:$0xff]
        %v215 = vld [vmem:[%s186 + $0x8] sm:$0xff]
        %v216 = vld [vmem:[#allocation2] sm:$0xff]
        %v217 = vld [vmem:[#allocation2 + $0x8] sm:$0xff]
        %vm218 = vcmask 130048
        %v220 = vsel %vm218, %v216, 0
        %v223 = vsel %vm218, %v217, 0
        %225 = vmatprep.subr.mxu0 0.0
        %226 = vmatpush1.msra.mxu0 0.0
        %227 = vmatprep.subr.mxu0 0.0
        %228 = vmatpush1.msra.mxu0 0.0
        %229 = vmatprep.subr.mxu0 0.0
        %230 = vmatpush1.msra.mxu0 0.0
        %231 = vmatprep.subr.mxu0 0.0
        %232 = vmatpush1.msra.mxu0 0.0
        %233 = vmatprep.subr.mxu0 0.0
        %234 = vmatpush1.msra.mxu0 0.0
        %235 = vmatprep.subr.mxu0 0.0
        %236 = vmatpush1.msra.mxu0 0.0
        %237 = vmatprep.subr.mxu0 0.0
        %238 = vmatpush1.msra.mxu0 0.0
        %239 = vmatprep.subr.mxu0 0.0
        %240 = vmatpush1.msra.mxu0 0.0
        %241 = vmatprep.subr.mxu0 0.0
        %242 = vmatpush1.msra.mxu0 0.0
        %243 = vmatprep.subr.mxu0 0.0
        %244 = vmatpush1.msra.mxu0 0.0
        %245 = vmatprep.subr.mxu0 0.0
        %246 = vmatpush1.msra.mxu0 0.0
        %247 = vmatprep.subr.mxu0 0.0
        %248 = vmatpush1.msra.mxu0 0.0
        %249 = vmatprep.subr.mxu0 0.0
        %250 = vmatpush1.msra.mxu0 0.0
        %251 = vmatprep.subr.mxu0 0.0
        %252 = vmatpush1.msra.mxu0 0.0
        %253 = vmatprep.subr.mxu0 0.0
        %v254 = vand.u32 %v215, 4294901760
        %255 = vmatpush1.msra.mxu0 %v254
        %256 = vmatprep.subr.mxu0 0.0
        %v257 = vand.u32 %v214, 4294901760
        %258 = vmatpush1.msra.mxu0 %v257
        %259 = vmatprep.subr.mxu0 0.0
        %260 = vmatpush2.msra.mxu0 0.0
        %261 = vmatprep.subr.mxu0 0.0
        %262 = vmatpush2.msra.mxu0 0.0
        %263 = vmatprep.subr.mxu0 0.0
        %264 = vmatpush2.msra.mxu0 0.0
        %265 = vmatprep.subr.mxu0 0.0
        %266 = vmatpush2.msra.mxu0 0.0
        %267 = vmatprep.subr.mxu0 0.0
        %268 = vmatpush2.msra.mxu0 0.0
        %269 = vmatprep.subr.mxu0 0.0
        %270 = vmatpush2.msra.mxu0 0.0
        %271 = vmatprep.subr.mxu0 0.0
        %272 = vmatpush2.msra.mxu0 0.0
        %273 = vmatprep.subr.mxu0 0.0
        %274 = vmatpush2.msra.mxu0 0.0
        %275 = vmatprep.subr.mxu0 0.0
        %276 = vmatpush2.msra.mxu0 0.0
        %277 = vmatprep.subr.mxu0 0.0
        %278 = vmatpush2.msra.mxu0 0.0
        %279 = vmatprep.subr.mxu0 0.0
        %280 = vmatpush2.msra.mxu0 0.0
        %281 = vmatprep.subr.mxu0 0.0
        %282 = vmatpush2.msra.mxu0 0.0
        %283 = vmatprep.subr.mxu0 0.0
        %284 = vmatpush2.msra.mxu0 0.0
        %285 = vmatprep.subr.mxu0 0.0
        %286 = vmatpush2.msra.mxu0 0.0
        %287 = vmatprep.subr.mxu0 0.0
        %288 = vmatpush2.msra.mxu0 0.0
        %289 = vmatprep.subr.mxu0 0.0
        %290 = vmatpush2.msra.mxu0 0.0
        %291 = vmatprep.mubr.f32.mxu0 0.0
        %v292 = vand.u32 %v220, 4294901760
        %v293 = vsub.f32 %v220, %v292
        %v294 = vand.u32 %v293, 4294901760
        %v295 = vsub.f32 %v293, %v294
        %v296 = vand.u32 %v295, 4294901760
        %297 = vmatmul.mubr.f32.gmra.mxu0 %v296
        %v298 = vpop.f32.mrf.mxu0
        %v299 = vadd.f32 0.0, %v298
        %v300 = vpop.f32.mrf.mxu0
        %301 = vmatprep.mubr.f32.mxu0 0.0
        %v302 = vand.u32 %v223, 4294901760
        %v303 = vsub.f32 %v223, %v302
        %v304 = vand.u32 %v303, 4294901760
        %v305 = vsub.f32 %v303, %v304
        %v306 = vand.u32 %v305, 4294901760
        %307 = vmatmul.mubr.f32.gmra.mxu0 %v306
        %v308 = vpop.f32.mrf.mxu0
        %v309 = vadd.f32 0.0, %v308
        %v310 = vpop.f32.mrf.mxu0
        %311 = vdwg.mxu0
        %312 = vmatprep.subr.mxu0 0.0
        %313 = vmatpush1.msra.mxu0 0.0
        %314 = vmatprep.subr.mxu0 0.0
        %315 = vmatpush1.msra.mxu0 0.0
        %316 = vmatprep.subr.mxu0 0.0
        %317 = vmatpush1.msra.mxu0 0.0
        %318 = vmatprep.subr.mxu0 0.0
        %319 = vmatpush1.msra.mxu0 0.0
        %320 = vmatprep.subr.mxu0 0.0
        %321 = vmatpush1.msra.mxu0 0.0
        %322 = vmatprep.subr.mxu0 0.0
        %323 = vmatpush1.msra.mxu0 0.0
        %324 = vmatprep.subr.mxu0 0.0
        %325 = vmatpush1.msra.mxu0 0.0
        %326 = vmatprep.subr.mxu0 0.0
        %327 = vmatpush1.msra.mxu0 0.0
        %328 = vmatprep.subr.mxu0 0.0
        %329 = vmatpush1.msra.mxu0 0.0
        %330 = vmatprep.subr.mxu0 0.0
        %331 = vmatpush1.msra.mxu0 0.0
        %332 = vmatprep.subr.mxu0 0.0
        %333 = vmatpush1.msra.mxu0 0.0
        %334 = vmatprep.subr.mxu0 0.0
        %335 = vmatpush1.msra.mxu0 0.0
        %336 = vmatprep.subr.mxu0 0.0
        %337 = vmatpush1.msra.mxu0 0.0
        %338 = vmatprep.subr.mxu0 0.0
        %339 = vmatpush1.msra.mxu0 0.0
        %340 = vmatprep.subr.mxu0 0.0
        %v341 = vand.u32 %v215, 4294901760
        %v342 = vsub.f32 %v215, %v341
        %v343 = vand.u32 %v342, 4294901760
        %v344 = vsub.f32 %v342, %v343
        %v345 = vand.u32 %v344, 4294901760
        %346 = vmatpush1.msra.mxu0 %v345
        %347 = vmatprep.subr.mxu0 0.0
        %v348 = vand.u32 %v214, 4294901760
        %v349 = vsub.f32 %v214, %v348
        %v350 = vand.u32 %v349, 4294901760
        %v351 = vsub.f32 %v349, %v350
        %v352 = vand.u32 %v351, 4294901760
        %353 = vmatpush1.msra.mxu0 %v352
        %354 = vmatprep.subr.mxu0 0.0
        %355 = vmatpush2.msra.mxu0 0.0
        %356 = vmatprep.subr.mxu0 0.0
        %357 = vmatpush2.msra.mxu0 0.0
        %358 = vmatprep.subr.mxu0 0.0
        %359 = vmatpush2.msra.mxu0 0.0
        %360 = vmatprep.subr.mxu0 0.0
        %361 = vmatpush2.msra.mxu0 0.0
        %362 = vmatprep.subr.mxu0 0.0
        %363 = vmatpush2.msra.mxu0 0.0
        %364 = vmatprep.subr.mxu0 0.0
        %365 = vmatpush2.msra.mxu0 0.0
        %366 = vmatprep.subr.mxu0 0.0
        %367 = vmatpush2.msra.mxu0 0.0
        %368 = vmatprep.subr.mxu0 0.0
        %369 = vmatpush2.msra.mxu0 0.0
        %370 = vmatprep.subr.mxu0 0.0
        %371 = vmatpush2.msra.mxu0 0.0
        %372 = vmatprep.subr.mxu0 0.0
        %373 = vmatpush2.msra.mxu0 0.0
        %374 = vmatprep.subr.mxu0 0.0
        %375 = vmatpush2.msra.mxu0 0.0
        %376 = vmatprep.subr.mxu0 0.0
        %377 = vmatpush2.msra.mxu0 0.0
        %378 = vmatprep.subr.mxu0 0.0
        %379 = vmatpush2.msra.mxu0 0.0
        %380 = vmatprep.subr.mxu0 0.0
        %381 = vmatpush2.msra.mxu0 0.0
        %382 = vmatprep.subr.mxu0 0.0
        %383 = vmatpush2.msra.mxu0 0.0
        %384 = vmatprep.subr.mxu0 0.0
        %385 = vmatpush2.msra.mxu0 0.0
        %386 = vmatprep.mubr.f32.mxu0 0.0
        %v387 = vand.u32 %v220, 4294901760
        %388 = vmatmul.mubr.f32.gmra.mxu0 %v387
        %v389 = vpop.f32.mrf.mxu0
        %v390 = vadd.f32 %v299, %v389
        %v391 = vpop.f32.mrf.mxu0
        %392 = vmatprep.mubr.f32.mxu0 0.0
        %v393 = vand.u32 %v223, 4294901760
        %394 = vmatmul.mubr.f32.gmra.mxu0 %v393
        %v395 = vpop.f32.mrf.mxu0
        %v396 = vadd.f32 %v309, %v395
        %v397 = vpop.f32.mrf.mxu0
        %398 = vdwg.mxu0
        %399 = vmatprep.subr.mxu0 0.0
        %400 = vmatpush1.msra.mxu0 0.0
        %401 = vmatprep.subr.mxu0 0.0
        %402 = vmatpush1.msra.mxu0 0.0
        %403 = vmatprep.subr.mxu0 0.0
        %404 = vmatpush1.msra.mxu0 0.0
        %405 = vmatprep.subr.mxu0 0.0
        %406 = vmatpush1.msra.mxu0 0.0
        %407 = vmatprep.subr.mxu0 0.0
        %408 = vmatpush1.msra.mxu0 0.0
        %409 = vmatprep.subr.mxu0 0.0
        %410 = vmatpush1.msra.mxu0 0.0
        %411 = vmatprep.subr.mxu0 0.0
        %412 = vmatpush1.msra.mxu0 0.0
        %413 = vmatprep.subr.mxu0 0.0
        %414 = vmatpush1.msra.mxu0 0.0
        %415 = vmatprep.subr.mxu0 0.0
        %416 = vmatpush1.msra.mxu0 0.0
        %417 = vmatprep.subr.mxu0 0.0
        %418 = vmatpush1.msra.mxu0 0.0
        %419 = vmatprep.subr.mxu0 0.0
        %420 = vmatpush1.msra.mxu0 0.0
        %421 = vmatprep.subr.mxu0 0.0
        %422 = vmatpush1.msra.mxu0 0.0
        %423 = vmatprep.subr.mxu0 0.0
        %424 = vmatpush1.msra.mxu0 0.0
        %425 = vmatprep.subr.mxu0 0.0
        %426 = vmatpush1.msra.mxu0 0.0
        %427 = vmatprep.subr.mxu0 0.0
        %v428 = vand.u32 %v215, 4294901760
        %v429 = vsub.f32 %v215, %v428
        %430 = vmatpush1.msra.mxu0 %v429
        %431 = vmatprep.subr.mxu0 0.0
        %v432 = vand.u32 %v214, 4294901760
        %v433 = vsub.f32 %v214, %v432
        %434 = vmatpush1.msra.mxu0 %v433
        %435 = vmatprep.subr.mxu0 0.0
        %436 = vmatpush2.msra.mxu0 0.0
        %437 = vmatprep.subr.mxu0 0.0
        %438 = vmatpush2.msra.mxu0 0.0
        %439 = vmatprep.subr.mxu0 0.0
        %440 = vmatpush2.msra.mxu0 0.0
        %441 = vmatprep.subr.mxu0 0.0
        %442 = vmatpush2.msra.mxu0 0.0
        %443 = vmatprep.subr.mxu0 0.0
        %444 = vmatpush2.msra.mxu0 0.0
        %445 = vmatprep.subr.mxu0 0.0
        %446 = vmatpush2.msra.mxu0 0.0
        %447 = vmatprep.subr.mxu0 0.0
        %448 = vmatpush2.msra.mxu0 0.0
        %449 = vmatprep.subr.mxu0 0.0
        %450 = vmatpush2.msra.mxu0 0.0
        %451 = vmatprep.subr.mxu0 0.0
        %452 = vmatpush2.msra.mxu0 0.0
        %453 = vmatprep.subr.mxu0 0.0
        %454 = vmatpush2.msra.mxu0 0.0
        %455 = vmatprep.subr.mxu0 0.0
        %456 = vmatpush2.msra.mxu0 0.0
        %457 = vmatprep.subr.mxu0 0.0
        %458 = vmatpush2.msra.mxu0 0.0
        %459 = vmatprep.subr.mxu0 0.0
        %460 = vmatpush2.msra.mxu0 0.0
        %461 = vmatprep.subr.mxu0 0.0
        %462 = vmatpush2.msra.mxu0 0.0
        %463 = vmatprep.subr.mxu0 0.0
        %464 = vmatpush2.msra.mxu0 0.0
        %465 = vmatprep.subr.mxu0 0.0
        %466 = vmatpush2.msra.mxu0 0.0
        %467 = vmatprep.mubr.f32.mxu0 0.0
        %v468 = vand.u32 %v220, 4294901760
        %v469 = vsub.f32 %v220, %v468
        %470 = vmatmul.mubr.f32.gmra.mxu0 %v469
        %v471 = vpop.f32.mrf.mxu0
        %v472 = vadd.f32 %v390, %v471
        %v473 = vpop.f32.mrf.mxu0
        %474 = vmatprep.mubr.f32.mxu0 0.0
        %v475 = vand.u32 %v223, 4294901760
        %v476 = vsub.f32 %v223, %v475
        %477 = vmatmul.mubr.f32.gmra.mxu0 %v476
        %v478 = vpop.f32.mrf.mxu0
        %v479 = vadd.f32 %v396, %v478
        %v480 = vpop.f32.mrf.mxu0
        %481 = vdwg.mxu0
        %482 = vmatprep.subr.mxu0 0.0
        %483 = vmatpush1.msra.mxu0 0.0
        %484 = vmatprep.subr.mxu0 0.0
        %485 = vmatpush1.msra.mxu0 0.0
        %486 = vmatprep.subr.mxu0 0.0
        %487 = vmatpush1.msra.mxu0 0.0
        %488 = vmatprep.subr.mxu0 0.0
        %489 = vmatpush1.msra.mxu0 0.0
        %490 = vmatprep.subr.mxu0 0.0
        %491 = vmatpush1.msra.mxu0 0.0
        %492 = vmatprep.subr.mxu0 0.0
        %493 = vmatpush1.msra.mxu0 0.0
        %494 = vmatprep.subr.mxu0 0.0
        %495 = vmatpush1.msra.mxu0 0.0
        %496 = vmatprep.subr.mxu0 0.0
        %497 = vmatpush1.msra.mxu0 0.0
        %498 = vmatprep.subr.mxu0 0.0
        %499 = vmatpush1.msra.mxu0 0.0
        %500 = vmatprep.subr.mxu0 0.0
        %501 = vmatpush1.msra.mxu0 0.0
        %502 = vmatprep.subr.mxu0 0.0
        %503 = vmatpush1.msra.mxu0 0.0
        %504 = vmatprep.subr.mxu0 0.0
        %505 = vmatpush1.msra.mxu0 0.0
        %506 = vmatprep.subr.mxu0 0.0
        %507 = vmatpush1.msra.mxu0 0.0
        %508 = vmatprep.subr.mxu0 0.0
        %509 = vmatpush1.msra.mxu0 0.0
        %510 = vmatprep.subr.mxu0 0.0
        %v511 = vand.u32 %v215, 4294901760
        %512 = vmatpush1.msra.mxu0 %v511
        %513 = vmatprep.subr.mxu0 0.0
        %v514 = vand.u32 %v214, 4294901760
        %515 = vmatpush1.msra.mxu0 %v514
        %516 = vmatprep.subr.mxu0 0.0
        %517 = vmatpush2.msra.mxu0 0.0
        %518 = vmatprep.subr.mxu0 0.0
        %519 = vmatpush2.msra.mxu0 0.0
        %520 = vmatprep.subr.mxu0 0.0
        %521 = vmatpush2.msra.mxu0 0.0
        %522 = vmatprep.subr.mxu0 0.0
        %523 = vmatpush2.msra.mxu0 0.0
        %524 = vmatprep.subr.mxu0 0.0
        %525 = vmatpush2.msra.mxu0 0.0
        %526 = vmatprep.subr.mxu0 0.0
        %527 = vmatpush2.msra.mxu0 0.0
        %528 = vmatprep.subr.mxu0 0.0
        %529 = vmatpush2.msra.mxu0 0.0
        %530 = vmatprep.subr.mxu0 0.0
        %531 = vmatpush2.msra.mxu0 0.0
        %532 = vmatprep.subr.mxu0 0.0
        %533 = vmatpush2.msra.mxu0 0.0
        %534 = vmatprep.subr.mxu0 0.0
        %535 = vmatpush2.msra.mxu0 0.0
        %536 = vmatprep.subr.mxu0 0.0
        %537 = vmatpush2.msra.mxu0 0.0
        %538 = vmatprep.subr.mxu0 0.0
        %539 = vmatpush2.msra.mxu0 0.0
        %540 = vmatprep.subr.mxu0 0.0
        %541 = vmatpush2.msra.mxu0 0.0
        %542 = vmatprep.subr.mxu0 0.0
        %543 = vmatpush2.msra.mxu0 0.0
        %544 = vmatprep.subr.mxu0 0.0
        %545 = vmatpush2.msra.mxu0 0.0
        %546 = vmatprep.subr.mxu0 0.0
        %547 = vmatpush2.msra.mxu0 0.0
        %548 = vmatprep.mubr.f32.mxu0 0.0
        %v549 = vand.u32 %v220, 4294901760
        %v550 = vsub.f32 %v220, %v549
        %v551 = vand.u32 %v550, 4294901760
        %552 = vmatmul.mubr.f32.gmra.mxu0 %v551
        %v553 = vpop.f32.mrf.mxu0
        %v554 = vadd.f32 %v472, %v553
        %v555 = vpop.f32.mrf.mxu0
        %556 = vmatprep.mubr.f32.mxu0 0.0
        %v557 = vand.u32 %v223, 4294901760
        %v558 = vsub.f32 %v223, %v557
        %v559 = vand.u32 %v558, 4294901760
        %560 = vmatmul.mubr.f32.gmra.mxu0 %v559
        %v561 = vpop.f32.mrf.mxu0
        %v562 = vadd.f32 %v479, %v561
        %v563 = vpop.f32.mrf.mxu0
        %564 = vdwg.mxu0
        %565 = vmatprep.subr.mxu0 0.0
        %566 = vmatpush1.msra.mxu0 0.0
        %567 = vmatprep.subr.mxu0 0.0
        %568 = vmatpush1.msra.mxu0 0.0
        %569 = vmatprep.subr.mxu0 0.0
        %570 = vmatpush1.msra.mxu0 0.0
        %571 = vmatprep.subr.mxu0 0.0
        %572 = vmatpush1.msra.mxu0 0.0
        %573 = vmatprep.subr.mxu0 0.0
        %574 = vmatpush1.msra.mxu0 0.0
        %575 = vmatprep.subr.mxu0 0.0
        %576 = vmatpush1.msra.mxu0 0.0
        %577 = vmatprep.subr.mxu0 0.0
        %578 = vmatpush1.msra.mxu0 0.0
        %579 = vmatprep.subr.mxu0 0.0
        %580 = vmatpush1.msra.mxu0 0.0
        %581 = vmatprep.subr.mxu0 0.0
        %582 = vmatpush1.msra.mxu0 0.0
        %583 = vmatprep.subr.mxu0 0.0
        %584 = vmatpush1.msra.mxu0 0.0
        %585 = vmatprep.subr.mxu0 0.0
        %586 = vmatpush1.msra.mxu0 0.0
        %587 = vmatprep.subr.mxu0 0.0
        %588 = vmatpush1.msra.mxu0 0.0
        %589 = vmatprep.subr.mxu0 0.0
        %590 = vmatpush1.msra.mxu0 0.0
        %591 = vmatprep.subr.mxu0 0.0
        %592 = vmatpush1.msra.mxu0 0.0
        %593 = vmatprep.subr.mxu0 0.0
        %v594 = vand.u32 %v215, 4294901760
        %v595 = vsub.f32 %v215, %v594
        %v596 = vand.u32 %v595, 4294901760
        %597 = vmatpush1.msra.mxu0 %v596
        %598 = vmatprep.subr.mxu0 0.0
        %v599 = vand.u32 %v214, 4294901760
        %v600 = vsub.f32 %v214, %v599
        %v601 = vand.u32 %v600, 4294901760
        %602 = vmatpush1.msra.mxu0 %v601
        %603 = vmatprep.subr.mxu0 0.0
        %604 = vmatpush2.msra.mxu0 0.0
        %605 = vmatprep.subr.mxu0 0.0
        %606 = vmatpush2.msra.mxu0 0.0
        %607 = vmatprep.subr.mxu0 0.0
        %608 = vmatpush2.msra.mxu0 0.0
        %609 = vmatprep.subr.mxu0 0.0
        %610 = vmatpush2.msra.mxu0 0.0
        %611 = vmatprep.subr.mxu0 0.0
        %612 = vmatpush2.msra.mxu0 0.0
        %613 = vmatprep.subr.mxu0 0.0
        %614 = vmatpush2.msra.mxu0 0.0
        %615 = vmatprep.subr.mxu0 0.0
        %616 = vmatpush2.msra.mxu0 0.0
        %617 = vmatprep.subr.mxu0 0.0
        %618 = vmatpush2.msra.mxu0 0.0
        %619 = vmatprep.subr.mxu0 0.0
        %620 = vmatpush2.msra.mxu0 0.0
        %621 = vmatprep.subr.mxu0 0.0
        %622 = vmatpush2.msra.mxu0 0.0
        %623 = vmatprep.subr.mxu0 0.0
        %624 = vmatpush2.msra.mxu0 0.0
        %625 = vmatprep.subr.mxu0 0.0
        %626 = vmatpush2.msra.mxu0 0.0
        %627 = vmatprep.subr.mxu0 0.0
        %628 = vmatpush2.msra.mxu0 0.0
        %629 = vmatprep.subr.mxu0 0.0
        %630 = vmatpush2.msra.mxu0 0.0
        %631 = vmatprep.subr.mxu0 0.0
        %632 = vmatpush2.msra.mxu0 0.0
        %633 = vmatprep.subr.mxu0 0.0
        %634 = vmatpush2.msra.mxu0 0.0
        %635 = vmatprep.mubr.f32.mxu0 0.0
        %v636 = vand.u32 %v220, 4294901760
        %637 = vmatmul.mubr.f32.gmra.mxu0 %v636
        %v638 = vpop.f32.mrf.mxu0
        %v639 = vadd.f32 %v554, %v638
        %v640 = vpop.f32.mrf.mxu0
        %641 = vmatprep.mubr.f32.mxu0 0.0
        %v642 = vand.u32 %v223, 4294901760
        %643 = vmatmul.mubr.f32.gmra.mxu0 %v642
        %v644 = vpop.f32.mrf.mxu0
        %v645 = vadd.f32 %v562, %v644
        %v646 = vpop.f32.mrf.mxu0
        %647 = vdwg.mxu0
        %648 = vmatprep.subr.mxu0 0.0
        %649 = vmatpush1.msra.mxu0 0.0
        %650 = vmatprep.subr.mxu0 0.0
        %651 = vmatpush1.msra.mxu0 0.0
        %652 = vmatprep.subr.mxu0 0.0
        %653 = vmatpush1.msra.mxu0 0.0
        %654 = vmatprep.subr.mxu0 0.0
        %655 = vmatpush1.msra.mxu0 0.0
        %656 = vmatprep.subr.mxu0 0.0
        %657 = vmatpush1.msra.mxu0 0.0
        %658 = vmatprep.subr.mxu0 0.0
        %659 = vmatpush1.msra.mxu0 0.0
        %660 = vmatprep.subr.mxu0 0.0
        %661 = vmatpush1.msra.mxu0 0.0
        %662 = vmatprep.subr.mxu0 0.0
        %663 = vmatpush1.msra.mxu0 0.0
        %664 = vmatprep.subr.mxu0 0.0
        %665 = vmatpush1.msra.mxu0 0.0
        %666 = vmatprep.subr.mxu0 0.0
        %667 = vmatpush1.msra.mxu0 0.0
        %668 = vmatprep.subr.mxu0 0.0
        %669 = vmatpush1.msra.mxu0 0.0
        %670 = vmatprep.subr.mxu0 0.0
        %671 = vmatpush1.msra.mxu0 0.0
        %672 = vmatprep.subr.mxu0 0.0
        %673 = vmatpush1.msra.mxu0 0.0
        %674 = vmatprep.subr.mxu0 0.0
        %675 = vmatpush1.msra.mxu0 0.0
        %676 = vmatprep.subr.mxu0 0.0
        %v677 = vand.u32 %v215, 4294901760
        %678 = vmatpush1.msra.mxu0 %v677
        %679 = vmatprep.subr.mxu0 0.0
        %v680 = vand.u32 %v214, 4294901760
        %681 = vmatpush1.msra.mxu0 %v680
        %682 = vmatprep.subr.mxu0 0.0
        %683 = vmatpush2.msra.mxu0 0.0
        %684 = vmatprep.subr.mxu0 0.0
        %685 = vmatpush2.msra.mxu0 0.0
        %686 = vmatprep.subr.mxu0 0.0
        %687 = vmatpush2.msra.mxu0 0.0
        %688 = vmatprep.subr.mxu0 0.0
        %689 = vmatpush2.msra.mxu0 0.0
        %690 = vmatprep.subr.mxu0 0.0
        %691 = vmatpush2.msra.mxu0 0.0
        %692 = vmatprep.subr.mxu0 0.0
        %693 = vmatpush2.msra.mxu0 0.0
        %694 = vmatprep.subr.mxu0 0.0
        %695 = vmatpush2.msra.mxu0 0.0
        %696 = vmatprep.subr.mxu0 0.0
        %697 = vmatpush2.msra.mxu0 0.0
        %698 = vmatprep.subr.mxu0 0.0
        %699 = vmatpush2.msra.mxu0 0.0
        %700 = vmatprep.subr.mxu0 0.0
        %701 = vmatpush2.msra.mxu0 0.0
        %702 = vmatprep.subr.mxu0 0.0
        %703 = vmatpush2.msra.mxu0 0.0
        %704 = vmatprep.subr.mxu0 0.0
        %705 = vmatpush2.msra.mxu0 0.0
        %706 = vmatprep.subr.mxu0 0.0
        %707 = vmatpush2.msra.mxu0 0.0
        %708 = vmatprep.subr.mxu0 0.0
        %709 = vmatpush2.msra.mxu0 0.0
        %710 = vmatprep.subr.mxu0 0.0
        %711 = vmatpush2.msra.mxu0 0.0
        %712 = vmatprep.subr.mxu0 0.0
        %713 = vmatpush2.msra.mxu0 0.0
        %714 = vmatprep.mubr.f32.mxu0 0.0
        %v715 = vand.u32 %v220, 4294901760
        %716 = vmatmul.mubr.f32.gmra.mxu0 %v715
        %v717 = vpop.f32.mrf.mxu0
        %v718 = vadd.f32 %v639, %v717
        %v719 = vpop.f32.mrf.mxu0
        %720 = vmatprep.mubr.f32.mxu0 0.0
        %v721 = vand.u32 %v223, 4294901760
        %722 = vmatmul.mubr.f32.gmra.mxu0 %v721
        %v723 = vpop.f32.mrf.mxu0
        %v724 = vadd.f32 %v645, %v723
        %v725 = vpop.f32.mrf.mxu0
        %726 = vdwg.mxu0
        %727 = vst [vmem:[%s213] sm:$0xff] %v718
        %728 = vst [vmem:[%s213 + $0x8] sm:$0xff] %v724
        %v729 = vsub.f32 %v214, %v718
        %v730 = vsub.f32 %v215, %v724
        %731 = vst [vmem:[%s206] sm:$0xff] %v729
        %732 = vst [vmem:[%s206 + $0x8] sm:$0xff] %v730
        %s733 = sand.u32 %s80, 1
        %s734 = scalar_lea.sflag [#allocation4], %s733
        %s735 = sand.u32 %s80, 1
        %s736 = smul.addr %s735, 16
        %s737 = scalar_lea.vmem [#allocation7], %s736
        %s738 = sand.u32 %s106, 1
        %s739 = scalar_lea.sflag [#allocation9], %s738
        %s740 = sand.u32 %s106, 1
        %s741 = smul.addr %s740, 16
        %s742 = scalar_lea.vmem [#allocation8], %s741
        // Predicated region
        $region37: #{tpu_custom_call.1} parent=27 // pred_check
          %p743 = pneg %p90
        $region38: #{tpu_custom_call.1} parent=27 // pred_check_branch
          %745 = sbr.rel (%p743) target = $region40
        $region39: #{tpu_custom_call.1} parent=27 // pred_region
          %s747 = ssub.s32 256, 256
          %748 = vsyncadd %s734, %s747
          %s749 = smul.addr %s25, 128
          %s750 = scalar_lea.hbm %s2, %s749
          %s751 = sshll.u32 %s737, 4
          %s752 = int_to_ptr.vmem [resolvable:$true] %s751
          %757 = dma.vmem_to_hbm [thread:$0]  %s752, 256, %s750, %s734, 128, 256, 8
        $region40: #{tpu_custom_call.1} parent=27 // pred_fallthru
          _
        // Predicated region
        $region41: #{tpu_custom_call.1} parent=27 // pred_check
          %p758 = pneg %p116
        $region42: #{tpu_custom_call.1} parent=27 // pred_check_branch
          %760 = sbr.rel (%p758) target = $region44
        $region43: #{tpu_custom_call.1} parent=27 // pred_region
          %s762 = ssub.s32 256, 256
          %763 = vsyncadd %s739, %s762
          %s764 = smul.addr %s25, 128
          %s765 = scalar_lea.hbm %s3, %s764
          %s766 = sshll.u32 %s742, 4
          %s767 = int_to_ptr.vmem [resolvable:$true] %s766
          %772 = dma.vmem_to_hbm [thread:$0]  %s767, 256, %s765, %s739, 128, 256, 8
        $region44: #{tpu_custom_call.1} parent=27 // pred_fallthru
          _
      $region28: #{tpu_custom_call.1} parent=5 // pred_fallthru
        _
      %p773 = scmp.le.s32.totalorder 2, %s20
      // Predicated region
      $region45: #{tpu_custom_call.1} parent=5 // pred_check
        %p774 = pneg %p773
      $region46: #{tpu_custom_call.1} parent=5 // pred_check_branch
        %776 = sbr.rel (%p774) target = $region48
      $region47: #{tpu_custom_call.1} parent=5 // pred_region
        %s777 = ssub.s32 %s20, 2
        // Predicated region
        $region49: #{tpu_custom_call.1} parent=47 // pred_check
          %p778 = pneg %p96
        $region50: #{tpu_custom_call.1} parent=47 // pred_check_branch
          %780 = sbr.rel (%p778) target = $region52
        $region51: #{tpu_custom_call.1} parent=47 // pred_region
          %s781 = sand.u32 %s81, 1
          %s782 = scalar_lea.sflag [#allocation4], %s781
          %s783 = sand.u32 %s81, 1
          %s784 = smul.addr %s783, 16
          %s785 = scalar_lea.vmem [#allocation7], %s784
          %786 = dma.done %s782, 256
        $region52: #{tpu_custom_call.1} parent=47 // pred_fallthru
          _
        // Predicated region
        $region53: #{tpu_custom_call.1} parent=47 // pred_check
          %p787 = pneg %p122
        $region54: #{tpu_custom_call.1} parent=47 // pred_check_branch
          %789 = sbr.rel (%p787) target = $region56
        $region55: #{tpu_custom_call.1} parent=47 // pred_region
          %s790 = sand.u32 %s107, 1
          %s791 = scalar_lea.sflag [#allocation9], %s790
          %s792 = sand.u32 %s107, 1
          %s793 = smul.addr %s792, 16
          %s794 = scalar_lea.vmem [#allocation8], %s793
          %795 = dma.done %s791, 256
        $region56: #{tpu_custom_call.1} parent=47 // pred_fallthru
          _
      $region48: #{tpu_custom_call.1} parent=5 // pred_fallthru
        _
    $region6: #{tpu_custom_call.1} parent=1 // loop_footer
      %s24 = sadd.s32 1, %s20
    $region7: #{tpu_custom_call.1} parent=1 // loop_footer_branch
      %19 = sbr.rel target = $region3
    $region8: #{tpu_custom_call.1} parent=1 // loop_exit
      _
    %796 = vsyncpa [#allocation3], 1
    %s797 = scalar_lea.sflag [#allocation3], 1
    %798 = vsyncpa %s797, 1
    %799 = vsyncpa [#allocation6], 1
    %s800 = scalar_lea.sflag [#allocation6], 1
    %801 = vsyncpa %s800, 1
    %802 = vsyncpa [#allocation4], 1
    %s803 = scalar_lea.sflag [#allocation4], 1
    %804 = vsyncpa %s803, 1
    %805 = vsyncpa [#allocation9], 1
    %s806 = scalar_lea.sflag [#allocation9], 1
    %807 = vsyncpa %s806, 1

// kernel: tpu_custom_call.1
$region0: #{tpu_custom_call.1}
  #allocation0 [shape = 'u32[]', space=smem, size = 0x4, offset = 0x4, fixed_abs, tag = 'smem constant byte address 0x4 - core index']
  #allocation1 [shape = 'u32[144,128]{1,0:T(1,128)}', space=vmem, size = 0x12000, scoped, tag = 'internal scratch']
  %s0 = inlined_call_operand.hbm [shape: f32[16,16], index: 0, kind: input, shape index: {}]
  %s1 = inlined_call_operand.hbm [shape: f32[16,256], index: 1, kind: input, shape index: {}]
  %s2 = inlined_call_operand.hbm [shape: f32[16,256], index: 2, kind: output, shape index: {0}]
  %s3 = inlined_call_operand.hbm [shape: f32[16,256], index: 3, kind: output, shape index: {1}]
  %4 = xla_tuple %s2, %s3
  %s5 = sld [smem:[#allocation0]]
  $region57: #{tpu_custom_call.1} parent=0
    _
  %s7 = ssub.s32 1, %s5
  %s8 = scalar_select 0, %s7, %s5
  $region1: #{tpu_custom_call.1} parent=0
    #allocation2 [shape = 'u8[8192]{0}', space=vmem, size = 0x2000, scoped, tag = 'input window, operand 0, single buffered']
    #allocation3 [shape = 's32[2]{0}', space=sflag, size = 0x8, scoped, tag = 'scoped memory for tpu_custom_call.1']
    #allocation4 [shape = 's32[2]{0}', space=sflag, size = 0x8, scoped, tag = 'scoped memory for tpu_custom_call.1']
    #allocation5 [shape = 'u8[16384]{0}', space=vmem, size = 0x4000, scoped, tag = 'input window, operand 1']
    #allocation6 [shape = 's32[2]{0}', space=sflag, size = 0x8, scoped, tag = 'scoped memory for tpu_custom_call.1']
    #allocation7 [shape = 'u8[16384]{0}', space=vmem, size = 0x4000, scoped, tag = 'output window, operand 0']
    #allocation8 [shape = 'u8[16384]{0}', space=vmem, size = 0x4000, scoped, tag = 'output window, operand 1']
    #allocation9 [shape = 's32[2]{0}', space=sflag, size = 0x8, scoped, tag = 'scoped memory for tpu_custom_call.1']
    %9 = vsyncpa [#allocation3], 0
    %10 = vsyncpa [#allocation6], 0
    %s11 = scalar_lea.sflag [#allocation6], 1
    %12 = vsyncpa %s11, 0
    %13 = vsyncpa [#allocation4], 0
    %s14 = scalar_lea.sflag [#allocation4], 1
    %15 = vsyncpa %s14, 0
    %16 = vsyncpa [#allocation9], 0
    %s17 = scalar_lea.sflag [#allocation9], 1
    %18 = vsyncpa %s17, 0
    loop: start=0, step=1, limit=4
    $region2: #{tpu_custom_call.1} parent=1 // loop_pre_header
      _
    $region3: #{tpu_custom_call.1} parent=1 // loop_header
      %s20 = sphi 0, %s24
      %p21 = scmp.ge.s32.totalorder %s20, 4
      %s28 = sphi 0, %s28
      %s30 = sphi 0, %s28
      %s31 = sphi 0, %s30
      %s45 = sphi 0, %s31
      %s51 = sphi 0, %s53
      %s54 = sphi 0, %s51
      %s55 = sphi 0, %s54
      %s71 = sphi 0, %s55
      %s77 = sphi 0, %s79
      %s80 = sphi 0, %s77
      %s81 = sphi 0, %s80
      %s97 = sphi 0, %s81
      %s103 = sphi 0, %s105
      %s106 = sphi 0, %s103
      %s107 = sphi 0, %s106
      %s123 = sphi 0, %s107
    $region4: #{tpu_custom_call.1} parent=1 // loop_header_branch
      %23 = sbr.rel (%p21) target = $region8
    $region5: #{tpu_custom_call.1} parent=1 // loop_body
      %s25 = ssub.s32 %s20, 1
      %s26 = ssub.s32 %s20, 2
      %s27 = sadd.s32 %s20, 1
      %s29 = sadd.s32 %s28, 1
      %p32 = scmp.eq.s32.totalorder %s20, 1
      %p33 = scmp.ne.s32.totalorder %s28, %s30
      %p34 = scmp.eq.s32.totalorder %s20, 0
      %p35 = por %p33, %p34
      %p36 = scmp.ne.s32.totalorder %s28, %s30
      %p37 = scmp.eq.s32.totalorder %s25, 1
      %p38 = por %p36, %p37
      %p39 = scmp.ne.s32.totalorder %s30, %s31
      %p40 = scmp.eq.s32.totalorder %s25, 0
      %p41 = por %p39, %p40
      %p42 = scmp.ne.s32.totalorder %s30, %s31
      %p43 = scmp.eq.s32.totalorder %s26, 1
      %p44 = por %p42, %p43
      %p46 = scmp.ne.s32.totalorder %s31, %s45
      %p47 = scmp.eq.s32.totalorder %s26, 0
      %p48 = por %p46, %p47
      %s49 = ssub.s32 %s20, %s27
      %p50 = scmp.eq.s32.totalorder %s49, 0
      %s52 = sadd.s32 %s51, 1
      %s53 = scalar_select %p50, %s51, %s52
      %p56 = pneg %p50
      %p57 = scmp.eq.s32.totalorder %s20, 1
      %p58 = por %p56, %p57
      %p59 = scmp.ne.s32.totalorder %s51, %s54
      %p60 = scmp.eq.s32.totalorder %s20, 0
      %p61 = por %p59, %p60
      %p62 = scmp.ne.s32.totalorder %s51, %s54
      %p63 = scmp.eq.s32.totalorder %s25, 1
      %p64 = por %p62, %p63
      %p65 = scmp.ne.s32.totalorder %s54, %s55
      %p66 = scmp.eq.s32.totalorder %s25, 0
      %p67 = por %p65, %p66
      %p68 = scmp.ne.s32.totalorder %s54, %s55
      %p69 = scmp.eq.s32.totalorder %s26, 1
      %p70 = por %p68, %p69
      %p72 = scmp.ne.s32.totalorder %s55, %s71
      %p73 = scmp.eq.s32.totalorder %s26, 0
      %p74 = por %p72, %p73
      %s75 = ssub.s32 %s20, %s27
      %p76 = scmp.eq.s32.totalorder %s75, 0
      %s78 = sadd.s32 %s77, 1
      %s79 = scalar_select %p76, %s77, %s78
      %p82 = pneg %p76
      %p83 = scmp.eq.s32.totalorder %s20, 1
      %p84 = por %p82, %p83
      %p85 = scmp.ne.s32.totalorder %s77, %s80
      %p86 = scmp.eq.s32.totalorder %s20, 0
      %p87 = por %p85, %p86
      %p88 = scmp.ne.s32.totalorder %s77, %s80
      %p89 = scmp.eq.s32.totalorder %s25, 1
      %p90 = por %p88, %p89
      %p91 = scmp.ne.s32.totalorder %s80, %s81
      %p92 = scmp.eq.s32.totalorder %s25, 0
      %p93 = por %p91, %p92
      %p94 = scmp.ne.s32.totalorder %s80, %s81
      %p95 = scmp.eq.s32.totalorder %s26, 1
      %p96 = por %p94, %p95
      %p98 = scmp.ne.s32.totalorder %s81, %s97
      %p99 = scmp.eq.s32.totalorder %s26, 0
      %p100 = por %p98, %p99
      %s101 = ssub.s32 %s20, %s27
      %p102 = scmp.eq.s32.totalorder %s101, 0
      %s104 = sadd.s32 %s103, 1
      %s105 = scalar_select %p102, %s103, %s104
      %p108 = pneg %p102
      %p109 = scmp.eq.s32.totalorder %s20, 1
      %p110 = por %p108, %p109
      %p111 = scmp.ne.s32.totalorder %s103, %s106
      %p112 = scmp.eq.s32.totalorder %s20, 0
      %p113 = por %p111, %p112
      %p114 = scmp.ne.s32.totalorder %s103, %s106
      %p115 = scmp.eq.s32.totalorder %s25, 1
      %p116 = por %p114, %p115
      %p117 = scmp.ne.s32.totalorder %s106, %s107
      %p118 = scmp.eq.s32.totalorder %s25, 0
      %p119 = por %p117, %p118
      %p120 = scmp.ne.s32.totalorder %s106, %s107
      %p121 = scmp.eq.s32.totalorder %s26, 1
      %p122 = por %p120, %p121
      %p124 = scmp.ne.s32.totalorder %s107, %s123
      %p125 = scmp.eq.s32.totalorder %s26, 0
      %p126 = por %p124, %p125
      %p127 = scmp.le.s32.totalorder 1, %s20
      %p128 = scmp.lt.s32.totalorder %s20, 3
      %p129 = pnand %p127, %p128
      %p130 = pneg %p129
      // Predicated region
      $region9: #{tpu_custom_call.1} parent=5 // pred_check
        _
      $region10: #{tpu_custom_call.1} parent=5 // pred_check_branch
        %132 = sbr.rel (%p129) target = $region12
      $region11: #{tpu_custom_call.1} parent=5 // pred_region
        %s133 = ssub.s32 %s20, 1
        // Predicated region
        $region13: #{tpu_custom_call.1} parent=11 // pred_check
          %p134 = pneg %p41
        $region14: #{tpu_custom_call.1} parent=11 // pred_check_branch
          %136 = sbr.rel (%p134) target = $region16
        $region15: #{tpu_custom_call.1} parent=11 // pred_region
          %s138 = ssub.s32 256, 256
          %139 = vsyncadd [#allocation3], %s138
          %s140 = sshll.u32 [#allocation2], 4
          %s141 = int_to_ptr.vmem [resolvable:$true] %s140
          %146 = dma.hbm_to_vmem [thread:$0]  %s0, 256, %s141, [#allocation3], 128, 128, 8
        $region16: #{tpu_custom_call.1} parent=11 // pred_fallthru
          _
      $region12: #{tpu_custom_call.1} parent=5 // pred_fallthru
        _
      %p147 = scmp.lt.s32.totalorder %s20, 2
      // Predicated region
      $region17: #{tpu_custom_call.1} parent=5 // pred_check
        %p148 = pneg %p147
      $region18: #{tpu_custom_call.1} parent=5 // pred_check_branch
        %150 = sbr.rel (%p148) target = $region20
      $region19: #{tpu_custom_call.1} parent=5 // pred_region
        // Predicated region
        $region21: #{tpu_custom_call.1} parent=19 // pred_check
          %p151 = pneg %p61
        $region22: #{tpu_custom_call.1} parent=19 // pred_check_branch
          %153 = sbr.rel (%p151) target = $region24
        $region23: #{tpu_custom_call.1} parent=19 // pred_region
          %s154 = sand.u32 %s51, 1
          %s155 = scalar_lea.sflag [#allocation6], %s154
          %s156 = sand.u32 %s51, 1
          %s157 = smul.addr %s156, 16
          %s158 = scalar_lea.vmem [#allocation5], %s157
          %s160 = ssub.s32 256, 256
          %161 = vsyncadd %s155, %s160
          %s162 = smul.addr %s20, 128
          %s163 = scalar_lea.hbm %s1, %s162
          %s164 = sshll.u32 %s158, 4
          %s165 = int_to_ptr.vmem [resolvable:$true] %s164
          %170 = dma.hbm_to_vmem [thread:$0]  %s163, 256, %s165, %s155, 256, 128, 8
        $region24: #{tpu_custom_call.1} parent=19 // pred_fallthru
          _
      $region20: #{tpu_custom_call.1} parent=5 // pred_fallthru
        _
      %p171 = scmp.le.s32.totalorder 1, %s20
      %p172 = scmp.lt.s32.totalorder %s20, 3
      %p173 = pnand %p171, %p172
      %p174 = pneg %p173
      // Predicated region
      $region25: #{tpu_custom_call.1} parent=5 // pred_check
        _
      $region26: #{tpu_custom_call.1} parent=5 // pred_check_branch
        %176 = sbr.rel (%p173) target = $region28
      $region27: #{tpu_custom_call.1} parent=5 // pred_region
        %s177 = ssub.s32 %s20, 1
        // Predicated region
        $region29: #{tpu_custom_call.1} parent=27 // pred_check
          %p178 = pneg %p41
        $region30: #{tpu_custom_call.1} parent=27 // pred_check_branch
          %180 = sbr.rel (%p178) target = $region32
        $region31: #{tpu_custom_call.1} parent=27 // pred_region
          %181 = dma.done [#allocation3], 256
        $region32: #{tpu_custom_call.1} parent=27 // pred_fallthru
          _
        %s182 = sand.u32 %s54, 1
        %s183 = scalar_lea.sflag [#allocation6], %s182
        %s184 = sand.u32 %s54, 1
        %s185 = smul.addr %s184, 16
        %s186 = scalar_lea.vmem [#allocation5], %s185
        // Predicated region
        $region33: #{tpu_custom_call.1} parent=27 // pred_check
          %p187 = pneg %p67
        $region34: #{tpu_custom_call.1} parent=27 // pred_check_branch
          %189 = sbr.rel (%p187) target = $region36
        $region35: #{tpu_custom_call.1} parent=27 // pred_region
          %190 = dma.done %s183, 256
        $region36: #{tpu_custom_call.1} parent=27 // pred_fallthru
          _
        %p191 = pneg %p41
        %p192 = pneg %p38
        %s193 = sand.u32 %s54, 1
        %s194 = scalar_lea.sflag [#allocation6], %s193
        %s195 = sand.u32 %s54, 1
        %s196 = smul.addr %s195, 16
        %s197 = scalar_lea.vmem [#allocation5], %s196
        %p198 = pneg %p67
        %p199 = pneg %p64
        %p200 = pneg %p93
        %p201 = pneg %p90
        %s202 = sand.u32 %s80, 1
        %s203 = scalar_lea.sflag [#allocation4], %s202
        %s204 = sand.u32 %s80, 1
        %s205 = smul.addr %s204, 16
        %s206 = scalar_lea.vmem [#allocation7], %s205
        %p207 = pneg %p119
        %p208 = pneg %p116
        %s209 = sand.u32 %s106, 1
        %s210 = scalar_lea.sflag [#allocation9], %s209
        %s211 = sand.u32 %s106, 1
        %s212 = smul.addr %s211, 16
        %s213 = scalar_lea.vmem [#allocation8], %s212
        %v214 = vld [vmem:[%s186] sm:$0xff]
        %v215 = vld [vmem:[%s186 + $0x8] sm:$0xff]
        %v216 = vld [vmem:[#allocation2] sm:$0xff]
        %v217 = vld [vmem:[#allocation2 + $0x8] sm:$0xff]
        %vm218 = vcmask 130048
        %v220 = vsel %vm218, %v216, 0
        %v223 = vsel %vm218, %v217, 0
        %225 = vmatprep.subr.mxu0 0.0
        %226 = vmatpush1.msra.mxu0 0.0
        %227 = vmatprep.subr.mxu0 0.0
        %228 = vmatpush1.msra.mxu0 0.0
        %229 = vmatprep.subr.mxu0 0.0
        %230 = vmatpush1.msra.mxu0 0.0
        %231 = vmatprep.subr.mxu0 0.0
        %232 = vmatpush1.msra.mxu0 0.0
        %233 = vmatprep.subr.mxu0 0.0
        %234 = vmatpush1.msra.mxu0 0.0
        %235 = vmatprep.subr.mxu0 0.0
        %236 = vmatpush1.msra.mxu0 0.0
        %237 = vmatprep.subr.mxu0 0.0
        %238 = vmatpush1.msra.mxu0 0.0
        %239 = vmatprep.subr.mxu0 0.0
        %240 = vmatpush1.msra.mxu0 0.0
        %241 = vmatprep.subr.mxu0 0.0
        %242 = vmatpush1.msra.mxu0 0.0
        %243 = vmatprep.subr.mxu0 0.0
        %244 = vmatpush1.msra.mxu0 0.0
        %245 = vmatprep.subr.mxu0 0.0
        %246 = vmatpush1.msra.mxu0 0.0
        %247 = vmatprep.subr.mxu0 0.0
        %248 = vmatpush1.msra.mxu0 0.0
        %249 = vmatprep.subr.mxu0 0.0
        %250 = vmatpush1.msra.mxu0 0.0
        %251 = vmatprep.subr.mxu0 0.0
        %252 = vmatpush1.msra.mxu0 0.0
        %253 = vmatprep.subr.mxu0 0.0
        %v254 = vand.u32 %v215, 4294901760
        %255 = vmatpush1.msra.mxu0 %v254
        %256 = vmatprep.subr.mxu0 0.0
        %v257 = vand.u32 %v214, 4294901760
        %258 = vmatpush1.msra.mxu0 %v257
        %259 = vmatprep.subr.mxu0 0.0
        %260 = vmatpush2.msra.mxu0 0.0
        %261 = vmatprep.subr.mxu0 0.0
        %262 = vmatpush2.msra.mxu0 0.0
        %263 = vmatprep.subr.mxu0 0.0
        %264 = vmatpush2.msra.mxu0 0.0
        %265 = vmatprep.subr.mxu0 0.0
        %266 = vmatpush2.msra.mxu0 0.0
        %267 = vmatprep.subr.mxu0 0.0
        %268 = vmatpush2.msra.mxu0 0.0
        %269 = vmatprep.subr.mxu0 0.0
        %270 = vmatpush2.msra.mxu0 0.0
        %271 = vmatprep.subr.mxu0 0.0
        %272 = vmatpush2.msra.mxu0 0.0
        %273 = vmatprep.subr.mxu0 0.0
        %274 = vmatpush2.msra.mxu0 0.0
        %275 = vmatprep.subr.mxu0 0.0
        %276 = vmatpush2.msra.mxu0 0.0
        %277 = vmatprep.subr.mxu0 0.0
        %278 = vmatpush2.msra.mxu0 0.0
        %279 = vmatprep.subr.mxu0 0.0
        %280 = vmatpush2.msra.mxu0 0.0
        %281 = vmatprep.subr.mxu0 0.0
        %282 = vmatpush2.msra.mxu0 0.0
        %283 = vmatprep.subr.mxu0 0.0
        %284 = vmatpush2.msra.mxu0 0.0
        %285 = vmatprep.subr.mxu0 0.0
        %286 = vmatpush2.msra.mxu0 0.0
        %287 = vmatprep.subr.mxu0 0.0
        %288 = vmatpush2.msra.mxu0 0.0
        %289 = vmatprep.subr.mxu0 0.0
        %290 = vmatpush2.msra.mxu0 0.0
        %291 = vmatprep.mubr.f32.mxu0 0.0
        %v292 = vand.u32 %v220, 4294901760
        %v293 = vsub.f32 %v220, %v292
        %v294 = vand.u32 %v293, 4294901760
        %v295 = vsub.f32 %v293, %v294
        %v296 = vand.u32 %v295, 4294901760
        %297 = vmatmul.mubr.f32.gmra.mxu0 %v296
        %v298 = vpop.f32.mrf.mxu0
        %v299 = vadd.f32 0.0, %v298
        %v300 = vpop.f32.mrf.mxu0
        %301 = vmatprep.mubr.f32.mxu0 0.0
        %v302 = vand.u32 %v223, 4294901760
        %v303 = vsub.f32 %v223, %v302
        %v304 = vand.u32 %v303, 4294901760
        %v305 = vsub.f32 %v303, %v304
        %v306 = vand.u32 %v305, 4294901760
        %307 = vmatmul.mubr.f32.gmra.mxu0 %v306
        %v308 = vpop.f32.mrf.mxu0
        %v309 = vadd.f32 0.0, %v308
        %v310 = vpop.f32.mrf.mxu0
        %311 = vdwg.mxu0
        %312 = vmatprep.subr.mxu0 0.0
        %313 = vmatpush1.msra.mxu0 0.0
        %314 = vmatprep.subr.mxu0 0.0
        %315 = vmatpush1.msra.mxu0 0.0
        %316 = vmatprep.subr.mxu0 0.0
        %317 = vmatpush1.msra.mxu0 0.0
        %318 = vmatprep.subr.mxu0 0.0
        %319 = vmatpush1.msra.mxu0 0.0
        %320 = vmatprep.subr.mxu0 0.0
        %321 = vmatpush1.msra.mxu0 0.0
        %322 = vmatprep.subr.mxu0 0.0
        %323 = vmatpush1.msra.mxu0 0.0
        %324 = vmatprep.subr.mxu0 0.0
        %325 = vmatpush1.msra.mxu0 0.0
        %326 = vmatprep.subr.mxu0 0.0
        %327 = vmatpush1.msra.mxu0 0.0
        %328 = vmatprep.subr.mxu0 0.0
        %329 = vmatpush1.msra.mxu0 0.0
        %330 = vmatprep.subr.mxu0 0.0
        %331 = vmatpush1.msra.mxu0 0.0
        %332 = vmatprep.subr.mxu0 0.0
        %333 = vmatpush1.msra.mxu0 0.0
        %334 = vmatprep.subr.mxu0 0.0
        %335 = vmatpush1.msra.mxu0 0.0
        %336 = vmatprep.subr.mxu0 0.0
        %337 = vmatpush1.msra.mxu0 0.0
        %338 = vmatprep.subr.mxu0 0.0
        %339 = vmatpush1.msra.mxu0 0.0
        %340 = vmatprep.subr.mxu0 0.0
        %v341 = vand.u32 %v215, 4294901760
        %v342 = vsub.f32 %v215, %v341
        %v343 = vand.u32 %v342, 4294901760
        %v344 = vsub.f32 %v342, %v343
        %v345 = vand.u32 %v344, 4294901760
        %346 = vmatpush1.msra.mxu0 %v345
        %347 = vmatprep.subr.mxu0 0.0
        %v348 = vand.u32 %v214, 4294901760
        %v349 = vsub.f32 %v214, %v348
        %v350 = vand.u32 %v349, 4294901760
        %v351 = vsub.f32 %v349, %v350
        %v352 = vand.u32 %v351, 4294901760
        %353 = vmatpush1.msra.mxu0 %v352
        %354 = vmatprep.subr.mxu0 0.0
        %355 = vmatpush2.msra.mxu0 0.0
        %356 = vmatprep.subr.mxu0 0.0
        %357 = vmatpush2.msra.mxu0 0.0
        %358 = vmatprep.subr.mxu0 0.0
        %359 = vmatpush2.msra.mxu0 0.0
        %360 = vmatprep.subr.mxu0 0.0
        %361 = vmatpush2.msra.mxu0 0.0
        %362 = vmatprep.subr.mxu0 0.0
        %363 = vmatpush2.msra.mxu0 0.0
        %364 = vmatprep.subr.mxu0 0.0
        %365 = vmatpush2.msra.mxu0 0.0
        %366 = vmatprep.subr.mxu0 0.0
        %367 = vmatpush2.msra.mxu0 0.0
        %368 = vmatprep.subr.mxu0 0.0
        %369 = vmatpush2.msra.mxu0 0.0
        %370 = vmatprep.subr.mxu0 0.0
        %371 = vmatpush2.msra.mxu0 0.0
        %372 = vmatprep.subr.mxu0 0.0
        %373 = vmatpush2.msra.mxu0 0.0
        %374 = vmatprep.subr.mxu0 0.0
        %375 = vmatpush2.msra.mxu0 0.0
        %376 = vmatprep.subr.mxu0 0.0
        %377 = vmatpush2.msra.mxu0 0.0
        %378 = vmatprep.subr.mxu0 0.0
        %379 = vmatpush2.msra.mxu0 0.0
        %380 = vmatprep.subr.mxu0 0.0
        %381 = vmatpush2.msra.mxu0 0.0
        %382 = vmatprep.subr.mxu0 0.0
        %383 = vmatpush2.msra.mxu0 0.0
        %384 = vmatprep.subr.mxu0 0.0
        %385 = vmatpush2.msra.mxu0 0.0
        %386 = vmatprep.mubr.f32.mxu0 0.0
        %v387 = vand.u32 %v220, 4294901760
        %388 = vmatmul.mubr.f32.gmra.mxu0 %v387
        %v389 = vpop.f32.mrf.mxu0
        %v390 = vadd.f32 %v299, %v389
        %v391 = vpop.f32.mrf.mxu0
        %392 = vmatprep.mubr.f32.mxu0 0.0
        %v393 = vand.u32 %v223, 4294901760
        %394 = vmatmul.mubr.f32.gmra.mxu0 %v393
        %v395 = vpop.f32.mrf.mxu0
        %v396 = vadd.f32 %v309, %v395
        %v397 = vpop.f32.mrf.mxu0
        %398 = vdwg.mxu0
        %399 = vmatprep.subr.mxu0 0.0
        %400 = vmatpush1.msra.mxu0 0.0
        %401 = vmatprep.subr.mxu0 0.0
        %402 = vmatpush1.msra.mxu0 0.0
        %403 = vmatprep.subr.mxu0 0.0
        %404 = vmatpush1.msra.mxu0 0.0
        %405 = vmatprep.subr.mxu0 0.0
        %406 = vmatpush1.msra.mxu0 0.0
        %407 = vmatprep.subr.mxu0 0.0
        %408 = vmatpush1.msra.mxu0 0.0
        %409 = vmatprep.subr.mxu0 0.0
        %410 = vmatpush1.msra.mxu0 0.0
        %411 = vmatprep.subr.mxu0 0.0
        %412 = vmatpush1.msra.mxu0 0.0
        %413 = vmatprep.subr.mxu0 0.0
        %414 = vmatpush1.msra.mxu0 0.0
        %415 = vmatprep.subr.mxu0 0.0
        %416 = vmatpush1.msra.mxu0 0.0
        %417 = vmatprep.subr.mxu0 0.0
        %418 = vmatpush1.msra.mxu0 0.0
        %419 = vmatprep.subr.mxu0 0.0
        %420 = vmatpush1.msra.mxu0 0.0
        %421 = vmatprep.subr.mxu0 0.0
        %422 = vmatpush1.msra.mxu0 0.0
        %423 = vmatprep.subr.mxu0 0.0
        %424 = vmatpush1.msra.mxu0 0.0
        %425 = vmatprep.subr.mxu0 0.0
        %426 = vmatpush1.msra.mxu0 0.0
        %427 = vmatprep.subr.mxu0 0.0
        %v428 = vand.u32 %v215, 4294901760
        %v429 = vsub.f32 %v215, %v428
        %430 = vmatpush1.msra.mxu0 %v429
        %431 = vmatprep.subr.mxu0 0.0
        %v432 = vand.u32 %v214, 4294901760
        %v433 = vsub.f32 %v214, %v432
        %434 = vmatpush1.msra.mxu0 %v433
        %435 = vmatprep.subr.mxu0 0.0
        %436 = vmatpush2.msra.mxu0 0.0
        %437 = vmatprep.subr.mxu0 0.0
        %438 = vmatpush2.msra.mxu0 0.0
        %439 = vmatprep.subr.mxu0 0.0
        %440 = vmatpush2.msra.mxu0 0.0
        %441 = vmatprep.subr.mxu0 0.0
        %442 = vmatpush2.msra.mxu0 0.0
        %443 = vmatprep.subr.mxu0 0.0
        %444 = vmatpush2.msra.mxu0 0.0
        %445 = vmatprep.subr.mxu0 0.0
        %446 = vmatpush2.msra.mxu0 0.0
        %447 = vmatprep.subr.mxu0 0.0
        %448 = vmatpush2.msra.mxu0 0.0
        %449 = vmatprep.subr.mxu0 0.0
        %450 = vmatpush2.msra.mxu0 0.0
        %451 = vmatprep.subr.mxu0 0.0
        %452 = vmatpush2.msra.mxu0 0.0
        %453 = vmatprep.subr.mxu0 0.0
        %454 = vmatpush2.msra.mxu0 0.0
        %455 = vmatprep.subr.mxu0 0.0
        %456 = vmatpush2.msra.mxu0 0.0
        %457 = vmatprep.subr.mxu0 0.0
        %458 = vmatpush2.msra.mxu0 0.0
        %459 = vmatprep.subr.mxu0 0.0
        %460 = vmatpush2.msra.mxu0 0.0
        %461 = vmatprep.subr.mxu0 0.0
        %462 = vmatpush2.msra.mxu0 0.0
        %463 = vmatprep.subr.mxu0 0.0
        %464 = vmatpush2.msra.mxu0 0.0
        %465 = vmatprep.subr.mxu0 0.0
        %466 = vmatpush2.msra.mxu0 0.0
        %467 = vmatprep.mubr.f32.mxu0 0.0
        %v468 = vand.u32 %v220, 4294901760
        %v469 = vsub.f32 %v220, %v468
        %470 = vmatmul.mubr.f32.gmra.mxu0 %v469
        %v471 = vpop.f32.mrf.mxu0
        %v472 = vadd.f32 %v390, %v471
        %v473 = vpop.f32.mrf.mxu0
        %474 = vmatprep.mubr.f32.mxu0 0.0
        %v475 = vand.u32 %v223, 4294901760
        %v476 = vsub.f32 %v223, %v475
        %477 = vmatmul.mubr.f32.gmra.mxu0 %v476
        %v478 = vpop.f32.mrf.mxu0
        %v479 = vadd.f32 %v396, %v478
        %v480 = vpop.f32.mrf.mxu0
        %481 = vdwg.mxu0
        %482 = vmatprep.subr.mxu0 0.0
        %483 = vmatpush1.msra.mxu0 0.0
        %484 = vmatprep.subr.mxu0 0.0
        %485 = vmatpush1.msra.mxu0 0.0
        %486 = vmatprep.subr.mxu0 0.0
        %487 = vmatpush1.msra.mxu0 0.0
        %488 = vmatprep.subr.mxu0 0.0
        %489 = vmatpush1.msra.mxu0 0.0
        %490 = vmatprep.subr.mxu0 0.0
        %491 = vmatpush1.msra.mxu0 0.0
        %492 = vmatprep.subr.mxu0 0.0
        %493 = vmatpush1.msra.mxu0 0.0
        %494 = vmatprep.subr.mxu0 0.0
        %495 = vmatpush1.msra.mxu0 0.0
        %496 = vmatprep.subr.mxu0 0.0
        %497 = vmatpush1.msra.mxu0 0.0
        %498 = vmatprep.subr.mxu0 0.0
        %499 = vmatpush1.msra.mxu0 0.0
        %500 = vmatprep.subr.mxu0 0.0
        %501 = vmatpush1.msra.mxu0 0.0
        %502 = vmatprep.subr.mxu0 0.0
        %503 = vmatpush1.msra.mxu0 0.0
        %504 = vmatprep.subr.mxu0 0.0
        %505 = vmatpush1.msra.mxu0 0.0
        %506 = vmatprep.subr.mxu0 0.0
        %507 = vmatpush1.msra.mxu0 0.0
        %508 = vmatprep.subr.mxu0 0.0
        %509 = vmatpush1.msra.mxu0 0.0
        %510 = vmatprep.subr.mxu0 0.0
        %v511 = vand.u32 %v215, 4294901760
        %512 = vmatpush1.msra.mxu0 %v511
        %513 = vmatprep.subr.mxu0 0.0
        %v514 = vand.u32 %v214, 4294901760
        %515 = vmatpush1.msra.mxu0 %v514
        %516 = vmatprep.subr.mxu0 0.0
        %517 = vmatpush2.msra.mxu0 0.0
        %518 = vmatprep.subr.mxu0 0.0
        %519 = vmatpush2.msra.mxu0 0.0
        %520 = vmatprep.subr.mxu0 0.0
        %521 = vmatpush2.msra.mxu0 0.0
        %522 = vmatprep.subr.mxu0 0.0
        %523 = vmatpush2.msra.mxu0 0.0
        %524 = vmatprep.subr.mxu0 0.0
        %525 = vmatpush2.msra.mxu0 0.0
        %526 = vmatprep.subr.mxu0 0.0
        %527 = vmatpush2.msra.mxu0 0.0
        %528 = vmatprep.subr.mxu0 0.0
        %529 = vmatpush2.msra.mxu0 0.0
        %530 = vmatprep.subr.mxu0 0.0
        %531 = vmatpush2.msra.mxu0 0.0
        %532 = vmatprep.subr.mxu0 0.0
        %533 = vmatpush2.msra.mxu0 0.0
        %534 = vmatprep.subr.mxu0 0.0
        %535 = vmatpush2.msra.mxu0 0.0
        %536 = vmatprep.subr.mxu0 0.0
        %537 = vmatpush2.msra.mxu0 0.0
        %538 = vmatprep.subr.mxu0 0.0
        %539 = vmatpush2.msra.mxu0 0.0
        %540 = vmatprep.subr.mxu0 0.0
        %541 = vmatpush2.msra.mxu0 0.0
        %542 = vmatprep.subr.mxu0 0.0
        %543 = vmatpush2.msra.mxu0 0.0
        %544 = vmatprep.subr.mxu0 0.0
        %545 = vmatpush2.msra.mxu0 0.0
        %546 = vmatprep.subr.mxu0 0.0
        %547 = vmatpush2.msra.mxu0 0.0
        %548 = vmatprep.mubr.f32.mxu0 0.0
        %v549 = vand.u32 %v220, 4294901760
        %v550 = vsub.f32 %v220, %v549
        %v551 = vand.u32 %v550, 4294901760
        %552 = vmatmul.mubr.f32.gmra.mxu0 %v551
        %v553 = vpop.f32.mrf.mxu0
        %v554 = vadd.f32 %v472, %v553
        %v555 = vpop.f32.mrf.mxu0
        %556 = vmatprep.mubr.f32.mxu0 0.0
        %v557 = vand.u32 %v223, 4294901760
        %v558 = vsub.f32 %v223, %v557
        %v559 = vand.u32 %v558, 4294901760
        %560 = vmatmul.mubr.f32.gmra.mxu0 %v559
        %v561 = vpop.f32.mrf.mxu0
        %v562 = vadd.f32 %v479, %v561
        %v563 = vpop.f32.mrf.mxu0
        %564 = vdwg.mxu0
        %565 = vmatprep.subr.mxu0 0.0
        %566 = vmatpush1.msra.mxu0 0.0
        %567 = vmatprep.subr.mxu0 0.0
        %568 = vmatpush1.msra.mxu0 0.0
        %569 = vmatprep.subr.mxu0 0.0
        %570 = vmatpush1.msra.mxu0 0.0
        %571 = vmatprep.subr.mxu0 0.0
        %572 = vmatpush1.msra.mxu0 0.0
        %573 = vmatprep.subr.mxu0 0.0
        %574 = vmatpush1.msra.mxu0 0.0
        %575 = vmatprep.subr.mxu0 0.0
        %576 = vmatpush1.msra.mxu0 0.0
        %577 = vmatprep.subr.mxu0 0.0
        %578 = vmatpush1.msra.mxu0 0.0
        %579 = vmatprep.subr.mxu0 0.0
        %580 = vmatpush1.msra.mxu0 0.0
        %581 = vmatprep.subr.mxu0 0.0
        %582 = vmatpush1.msra.mxu0 0.0
        %583 = vmatprep.subr.mxu0 0.0
        %584 = vmatpush1.msra.mxu0 0.0
        %585 = vmatprep.subr.mxu0 0.0
        %586 = vmatpush1.msra.mxu0 0.0
        %587 = vmatprep.subr.mxu0 0.0
        %588 = vmatpush1.msra.mxu0 0.0
        %589 = vmatprep.subr.mxu0 0.0
        %590 = vmatpush1.msra.mxu0 0.0
        %591 = vmatprep.subr.mxu0 0.0
        %592 = vmatpush1.msra.mxu0 0.0
        %593 = vmatprep.subr.mxu0 0.0
        %v594 = vand.u32 %v215, 4294901760
        %v595 = vsub.f32 %v215, %v594
        %v596 = vand.u32 %v595, 4294901760
        %597 = vmatpush1.msra.mxu0 %v596
        %598 = vmatprep.subr.mxu0 0.0
        %v599 = vand.u32 %v214, 4294901760
        %v600 = vsub.f32 %v214, %v599
        %v601 = vand.u32 %v600, 4294901760
        %602 = vmatpush1.msra.mxu0 %v601
        %603 = vmatprep.subr.mxu0 0.0
        %604 = vmatpush2.msra.mxu0 0.0
        %605 = vmatprep.subr.mxu0 0.0
        %606 = vmatpush2.msra.mxu0 0.0
        %607 = vmatprep.subr.mxu0 0.0
        %608 = vmatpush2.msra.mxu0 0.0
        %609 = vmatprep.subr.mxu0 0.0
        %610 = vmatpush2.msra.mxu0 0.0
        %611 = vmatprep.subr.mxu0 0.0
        %612 = vmatpush2.msra.mxu0 0.0
        %613 = vmatprep.subr.mxu0 0.0
        %614 = vmatpush2.msra.mxu0 0.0
        %615 = vmatprep.subr.mxu0 0.0
        %616 = vmatpush2.msra.mxu0 0.0
        %617 = vmatprep.subr.mxu0 0.0
        %618 = vmatpush2.msra.mxu0 0.0
        %619 = vmatprep.subr.mxu0 0.0
        %620 = vmatpush2.msra.mxu0 0.0
        %621 = vmatprep.subr.mxu0 0.0
        %622 = vmatpush2.msra.mxu0 0.0
        %623 = vmatprep.subr.mxu0 0.0
        %624 = vmatpush2.msra.mxu0 0.0
        %625 = vmatprep.subr.mxu0 0.0
        %626 = vmatpush2.msra.mxu0 0.0
        %627 = vmatprep.subr.mxu0 0.0
        %628 = vmatpush2.msra.mxu0 0.0
        %629 = vmatprep.subr.mxu0 0.0
        %630 = vmatpush2.msra.mxu0 0.0
        %631 = vmatprep.subr.mxu0 0.0
        %632 = vmatpush2.msra.mxu0 0.0
        %633 = vmatprep.subr.mxu0 0.0
        %634 = vmatpush2.msra.mxu0 0.0
        %635 = vmatprep.mubr.f32.mxu0 0.0
        %v636 = vand.u32 %v220, 4294901760
        %637 = vmatmul.mubr.f32.gmra.mxu0 %v636
        %v638 = vpop.f32.mrf.mxu0
        %v639 = vadd.f32 %v554, %v638
        %v640 = vpop.f32.mrf.mxu0
        %641 = vmatprep.mubr.f32.mxu0 0.0
        %v642 = vand.u32 %v223, 4294901760
        %643 = vmatmul.mubr.f32.gmra.mxu0 %v642
        %v644 = vpop.f32.mrf.mxu0
        %v645 = vadd.f32 %v562, %v644
        %v646 = vpop.f32.mrf.mxu0
        %647 = vdwg.mxu0
        %648 = vmatprep.subr.mxu0 0.0
        %649 = vmatpush1.msra.mxu0 0.0
        %650 = vmatprep.subr.mxu0 0.0
        %651 = vmatpush1.msra.mxu0 0.0
        %652 = vmatprep.subr.mxu0 0.0
        %653 = vmatpush1.msra.mxu0 0.0
        %654 = vmatprep.subr.mxu0 0.0
        %655 = vmatpush1.msra.mxu0 0.0
        %656 = vmatprep.subr.mxu0 0.0
        %657 = vmatpush1.msra.mxu0 0.0
        %658 = vmatprep.subr.mxu0 0.0
        %659 = vmatpush1.msra.mxu0 0.0
        %660 = vmatprep.subr.mxu0 0.0
        %661 = vmatpush1.msra.mxu0 0.0
        %662 = vmatprep.subr.mxu0 0.0
        %663 = vmatpush1.msra.mxu0 0.0
        %664 = vmatprep.subr.mxu0 0.0
        %665 = vmatpush1.msra.mxu0 0.0
        %666 = vmatprep.subr.mxu0 0.0
        %667 = vmatpush1.msra.mxu0 0.0
        %668 = vmatprep.subr.mxu0 0.0
        %669 = vmatpush1.msra.mxu0 0.0
        %670 = vmatprep.subr.mxu0 0.0
        %671 = vmatpush1.msra.mxu0 0.0
        %672 = vmatprep.subr.mxu0 0.0
        %673 = vmatpush1.msra.mxu0 0.0
        %674 = vmatprep.subr.mxu0 0.0
        %675 = vmatpush1.msra.mxu0 0.0
        %676 = vmatprep.subr.mxu0 0.0
        %v677 = vand.u32 %v215, 4294901760
        %678 = vmatpush1.msra.mxu0 %v677
        %679 = vmatprep.subr.mxu0 0.0
        %v680 = vand.u32 %v214, 4294901760
        %681 = vmatpush1.msra.mxu0 %v680
        %682 = vmatprep.subr.mxu0 0.0
        %683 = vmatpush2.msra.mxu0 0.0
        %684 = vmatprep.subr.mxu0 0.0
        %685 = vmatpush2.msra.mxu0 0.0
        %686 = vmatprep.subr.mxu0 0.0
        %687 = vmatpush2.msra.mxu0 0.0
        %688 = vmatprep.subr.mxu0 0.0
        %689 = vmatpush2.msra.mxu0 0.0
        %690 = vmatprep.subr.mxu0 0.0
        %691 = vmatpush2.msra.mxu0 0.0
        %692 = vmatprep.subr.mxu0 0.0
        %693 = vmatpush2.msra.mxu0 0.0
        %694 = vmatprep.subr.mxu0 0.0
        %695 = vmatpush2.msra.mxu0 0.0
        %696 = vmatprep.subr.mxu0 0.0
        %697 = vmatpush2.msra.mxu0 0.0
        %698 = vmatprep.subr.mxu0 0.0
        %699 = vmatpush2.msra.mxu0 0.0
        %700 = vmatprep.subr.mxu0 0.0
        %701 = vmatpush2.msra.mxu0 0.0
        %702 = vmatprep.subr.mxu0 0.0
        %703 = vmatpush2.msra.mxu0 0.0
        %704 = vmatprep.subr.mxu0 0.0
        %705 = vmatpush2.msra.mxu0 0.0
        %706 = vmatprep.subr.mxu0 0.0
        %707 = vmatpush2.msra.mxu0 0.0
        %708 = vmatprep.subr.mxu0 0.0
        %709 = vmatpush2.msra.mxu0 0.0
        %710 = vmatprep.subr.mxu0 0.0
        %711 = vmatpush2.msra.mxu0 0.0
        %712 = vmatprep.subr.mxu0 0.0
        %713 = vmatpush2.msra.mxu0 0.0
        %714 = vmatprep.mubr.f32.mxu0 0.0
        %v715 = vand.u32 %v220, 4294901760
        %716 = vmatmul.mubr.f32.gmra.mxu0 %v715
        %v717 = vpop.f32.mrf.mxu0
        %v718 = vadd.f32 %v639, %v717
        %v719 = vpop.f32.mrf.mxu0
        %720 = vmatprep.mubr.f32.mxu0 0.0
        %v721 = vand.u32 %v223, 4294901760
        %722 = vmatmul.mubr.f32.gmra.mxu0 %v721
        %v723 = vpop.f32.mrf.mxu0
        %v724 = vadd.f32 %v645, %v723
        %v725 = vpop.f32.mrf.mxu0
        %726 = vdwg.mxu0
        %727 = vst [vmem:[%s213] sm:$0xff] %v718
        %728 = vst [vmem:[%s213 + $0x8] sm:$0xff] %v724
        %v729 = vsub.f32 %v214, %v718
        %v730 = vsub.f32 %v215, %v724
        %731 = vst [vmem:[%s206] sm:$0xff] %v729
        %732 = vst [vmem:[%s206 + $0x8] sm:$0xff] %v730
        %s733 = sand.u32 %s80, 1
        %s734 = scalar_lea.sflag [#allocation4], %s733
        %s735 = sand.u32 %s80, 1
        %s736 = smul.addr %s735, 16
        %s737 = scalar_lea.vmem [#allocation7], %s736
        %s738 = sand.u32 %s106, 1
        %s739 = scalar_lea.sflag [#allocation9], %s738
        %s740 = sand.u32 %s106, 1
        %s741 = smul.addr %s740, 16
        %s742 = scalar_lea.vmem [#allocation8], %s741
        // Predicated region
        $region37: #{tpu_custom_call.1} parent=27 // pred_check
          %p743 = pneg %p90
        $region38: #{tpu_custom_call.1} parent=27 // pred_check_branch
          %745 = sbr.rel (%p743) target = $region40
        $region39: #{tpu_custom_call.1} parent=27 // pred_region
          %s747 = ssub.s32 256, 256
          %748 = vsyncadd %s734, %s747
          %s749 = smul.addr %s25, 128
          %s750 = scalar_lea.hbm %s2, %s749
          %s751 = sshll.u32 %s737, 4
          %s752 = int_to_ptr.vmem [resolvable:$true] %s751
          %757 = dma.vmem_to_hbm [thread:$0]  %s752, 256, %s750, %s734, 128, 256, 8
        $region40: #{tpu_custom_call.1} parent=27 // pred_fallthru
          _
        // Predicated region
        $region41: #{tpu_custom_call.1} parent=27 // pred_check
          %p758 = pneg %p116
        $region42: #{tpu_custom_call.1} parent=27 // pred_check_branch
          %760 = sbr.rel (%p758) target = $region44
        $region43: #{tpu_custom_call.1} parent=27 // pred_region
          %s762 = ssub.s32 256, 256
          %763 = vsyncadd %s739, %s762
          %s764 = smul.addr %s25, 128
          %s765 = scalar_lea.hbm %s3, %s764
          %s766 = sshll.u32 %s742, 4
          %s767 = int_to_ptr.vmem [resolvable:$true] %s766
          %772 = dma.vmem_to_hbm [thread:$0]  %s767, 256, %s765, %s739, 128, 256, 8
        $region44: #{tpu_custom_call.1} parent=27 // pred_fallthru
          _
      $region28: #{tpu_custom_call.1} parent=5 // pred_fallthru
        _
      %p773 = scmp.le.s32.totalorder 2, %s20
      // Predicated region
      $region45: #{tpu_custom_call.1} parent=5 // pred_check
        %p774 = pneg %p773
      $region46: #{tpu_custom_call.1} parent=5 // pred_check_branch
        %776 = sbr.rel (%p774) target = $region48
      $region47: #{tpu_custom_call.1} parent=5 // pred_region
        %s777 = ssub.s32 %s20, 2
        // Predicated region
        $region49: #{tpu_custom_call.1} parent=47 // pred_check
          %p778 = pneg %p96
        $region50: #{tpu_custom_call.1} parent=47 // pred_check_branch
          %780 = sbr.rel (%p778) target = $region52
        $region51: #{tpu_custom_call.1} parent=47 // pred_region
          %s781 = sand.u32 %s81, 1
          %s782 = scalar_lea.sflag [#allocation4], %s781
          %s783 = sand.u32 %s81, 1
          %s784 = smul.addr %s783, 16
          %s785 = scalar_lea.vmem [#allocation7], %s784
          %786 = dma.done %s782, 256
        $region52: #{tpu_custom_call.1} parent=47 // pred_fallthru
          _
        // Predicated region
        $region53: #{tpu_custom_call.1} parent=47 // pred_check
          %p787 = pneg %p122
        $region54: #{tpu_custom_call.1} parent=47 // pred_check_branch
          %789 = sbr.rel (%p787) target = $region56
        $region55: #{tpu_custom_call.1} parent=47 // pred_region
          %s790 = sand.u32 %s107, 1
          %s791 = scalar_lea.sflag [#allocation9], %s790
          %s792 = sand.u32 %s107, 1
          %s793 = smul.addr %s792, 16
          %s794 = scalar_lea.vmem [#allocation8], %s793
          %795 = dma.done %s791, 256
        $region56: #{tpu_custom_call.1} parent=47 // pred_fallthru
          _
      $region48: #{tpu_custom_call.1} parent=5 // pred_fallthru
        _
    $region6: #{tpu_custom_call.1} parent=1 // loop_footer
      %s24 = sadd.s32 1, %s20
    $region7: #{tpu_custom_call.1} parent=1 // loop_footer_branch
      %19 = sbr.rel target = $region3
    $region8: #{tpu_custom_call.1} parent=1 // loop_exit
      _
    %796 = vsyncpa [#allocation3], 1
    %s797 = scalar_lea.sflag [#allocation3], 1
    %798 = vsyncpa %s797, 1
    %799 = vsyncpa [#allocation6], 1
    %s800 = scalar_lea.sflag [#allocation6], 1
    %801 = vsyncpa %s800, 1
    %802 = vsyncpa [#allocation4], 1
    %s803 = scalar_lea.sflag [#allocation4], 1
    %804 = vsyncpa %s803, 1
    %805 = vsyncpa [#allocation9], 1
    %s806 = scalar_lea.sflag [#allocation9], 1
    %807 = vsyncpa %s806, 1

</llo_original>
